<compile_context>
chip_gen: v5e
topology: v5e:2x2
jax: 0.10.0
libtpu: 0.0.40
codegen_flags: <defaults>
</compile_context>

<pallas_src>
import math

import jax
import jax.numpy as jnp
from jax.experimental import pallas as pl
from jax.experimental.pallas import tpu as pltpu

# ----------------------------- config (small) -----------------------------
B = 2        # batch
S = 8        # sequence length
D = 32       # d_model
H = 4        # nhead
DH = D // H  # dim per head
F = 64       # ff_dim (small stand-in for 2048)
EPS = 1e-5   # nn.LayerNorm default eps


def _layernorm(x, gamma, beta):
    mu = jnp.mean(x, axis=-1, keepdims=True)
    var = jnp.mean((x - mu) ** 2, axis=-1, keepdims=True)
    return (x - mu) * jax.lax.rsqrt(var + EPS) * gamma + beta


def encoder_layer_kernel(
    x_ref,                      # (S, D)   one batch's activations
    ln1_g_ref, ln1_b_ref,       # (1, D)
    wqkv_ref, bqkv_ref,         # (D, 3D), (1, 3D)  (1/sqrt(DH) folded into Q part)
    wo_ref, bo_ref,             # (D, D), (1, D)
    ln2_g_ref, ln2_b_ref,       # (1, D)
    w1_ref, b1_ref,             # (D, F), (1, F)
    w2_ref, b2_ref,             # (F, D), (1, D)
    o_ref,                      # (S, D)
):
    x = x_ref[...]                                            # (S, D) f32

    # ----- x2 = norm1(x) -----
    x2 = _layernorm(x, ln1_g_ref[...], ln1_b_ref[...])

    # ----- fused QKV projection: one full-depth MXU push, output width 3*D -----
    # (bf16 operands + f32 accumulate at real sizes.)
    qkv = jnp.dot(x2, wqkv_ref[...], preferred_element_type=jnp.float32) + bqkv_ref[...]

    # ----- head-batched layout: one lane-split reshape + one leading-axis einshape.
    # Columns of wqkv are head-major, so g = part*H + h; no per-head lane extracts,
    # no concatenates. Leading-axis slices below are cheap.
    qkv = qkv.reshape(S, 3 * H, DH)                           # (S, 3H, DH)
    qkv = pltpu.einshape("sgd->gsd", qkv)                     # (3H, S, DH)
    q = qkv[0 * H:1 * H]                                      # (H, S, DH), already scaled
    k = qkv[1 * H:2 * H]
    v = qkv[2 * H:3 * H]

    # ----- scores / softmax / PV as head-batched contractions (K untransposed) -----
    s = jnp.einsum("hqd,hkd->hqk", q, k, preferred_element_type=jnp.float32)   # (H,S,S)
    m = jnp.max(s, axis=-1, keepdims=True)
    e = jnp.exp(s - m)
    l = jnp.sum(e, axis=-1, keepdims=True)
    ctx = jnp.einsum("hqk,hkd->hqd", e, v, preferred_element_type=jnp.float32)  # (H,S,DH)
    # Deferred normalization: scale ctx (O(S*DH)) instead of the probs (O(S*S));
    # approx reciprocal runs on the otherwise-idle EUP slot.
    ctx = ctx * pl.reciprocal(l, approx=True)

    # ----- output projection with the head reduction folded into the MXU:
    # one relayout back to (S, H*DH), then a single (S,D)x(D,D) full-depth matmul
    # (no (H,N,D) intermediate, no H-way VPU sum).
    ctx = pltpu.einshape("hsd->shd", ctx).reshape(S, D)       # (S, H*DH) = (S, D)
    attn = jnp.dot(ctx, wo_ref[...], preferred_element_type=jnp.float32) + bo_ref[...]

    x = x + attn                                              # dropout1 == identity

    # ----- x2 = norm2(x); feed-forward; residual -----
    x2 = _layernorm(x, ln2_g_ref[...], ln2_b_ref[...])
    h1 = jnp.dot(x2, w1_ref[...], preferred_element_type=jnp.float32) + b1_ref[...]
    h1 = jnp.maximum(h1, 0.0)                                 # ReLU
    ff = jnp.dot(h1, w2_ref[...], preferred_element_type=jnp.float32) + b2_ref[...]
    # TODO(synk): D=32 output keeps masked partial stores at toy scale; at real sizes
    # keep D a multiple of 128 (lane-dense) rather than reshaping the toy slab.
    o_ref[...] = x + ff                                       # dropout2 == identity


def transformer_encoder_layer(x, params):
    """x: (B, S, D) float32. params: dict of weight arrays (see init_params)."""
    assert x.shape == (B, S, D)
    scale = 1.0 / math.sqrt(DH)

    # Trace-time weight prep (constant-folded; nothing happens per step):
    #   * fuse q/k/v into one (D, 3D) weight with 1/sqrt(DH) folded into the Q columns
    #   * wo stays (D, D): the head reduction is contracted in one matmul in-kernel
    wqkv = jnp.concatenate([params["wq"] * scale, params["wk"], params["wv"]], axis=1)
    bqkv = jnp.concatenate([params["bq"] * scale, params["bk"], params["bv"]], axis=1)

    args = (
        x,
        params["ln1_g"], params["ln1_b"],
        wqkv, bqkv,
        params["wo"], params["bo"],
        params["ln2_g"], params["ln2_b"],
        params["w1"], params["b1"], params["w2"], params["b2"],
    )

    # VMEM budget derived from the actual operand footprint (double-buffered blocks
    # + relayout headroom) instead of a hardcoded constant. At real sizes re-derive
    # per generation: stay under ~48 MiB usable on v7x (64 MiB physical) vs ~100 MiB
    # on v5e/v6e (128 MiB physical).
    nbytes = sum(int(a.size) * a.dtype.itemsize for a in args) + B * S * D * 4
    vmem_limit = min(4 * nbytes + (4 << 20), 64 << 20)

    row_spec = pl.BlockSpec((None, S, D), lambda b: (b, 0, 0))

    def full(shape):
        return pl.BlockSpec(shape, lambda b, n=len(shape): (0,) * n)

    out = pl.pallas_call(
        encoder_layer_kernel,
        out_shape=jax.ShapeDtypeStruct((B, S, D), jnp.float32),
        grid=(B,),
        in_specs=[
            row_spec,                       # x: one batch block per grid step
            full((1, D)), full((1, D)),     # ln1
            full((D, 3 * D)), full((1, 3 * D)),  # fused qkv
            full((D, D)), full((1, D)),     # out projection
            full((1, D)), full((1, D)),     # ln2
            full((D, F)), full((1, F)),     # ffn in
            full((F, D)), full((1, D)),     # ffn out
        ],
        out_specs=row_spec,
        # Output written over the x slab: same shape/dtype, x fully consumed first.
        input_output_aliases={0: 0},
        compiler_params=pltpu.CompilerParams(
            # Batch axis is independent -> "parallel" feeds both v7x TensorCores
            # (harmless on single-TC v5e/v6e).
            dimension_semantics=("parallel",),
            vmem_limit_bytes=vmem_limit,
        ),
    )(*args)
    return out


def init_params(key):
    ks = jax.random.split(key, 12)
    s = 0.05
    return {
        "ln1_g": jnp.ones((1, D), jnp.float32),
        "ln1_b": jnp.zeros((1, D), jnp.float32),
        "wq": s * jax.random.normal(ks[0], (D, D), jnp.float32),
        "bq": s * jax.random.normal(ks[1], (1, D), jnp.float32),
        "wk": s * jax.random.normal(ks[2], (D, D), jnp.float32),
        "bk": s * jax.random.normal(ks[3], (1, D), jnp.float32),
        "wv": s * jax.random.normal(ks[4], (D, D), jnp.float32),
        "bv": s * jax.random.normal(ks[5], (1, D), jnp.float32),
        "wo": s * jax.random.normal(ks[6], (D, D), jnp.float32),
        "bo": s * jax.random.normal(ks[7], (1, D), jnp.float32),
        "ln2_g": jnp.ones((1, D), jnp.float32),
        "ln2_b": jnp.zeros((1, D), jnp.float32),
        "w1": s * jax.random.normal(ks[8], (D, F), jnp.float32),
        "b1": s * jax.random.normal(ks[9], (1, F), jnp.float32),
        "w2": s * jax.random.normal(ks[10], (F, D), jnp.float32),
        "b2": s * jax.random.normal(ks[11], (1, D), jnp.float32),
    }


def reference(x, p):
    """Pure-JAX reference mirroring the PyTorch forward (eval mode, mask=None)."""
    def ln(v, g, b):
        mu = v.mean(-1, keepdims=True)
        var = ((v - mu) ** 2).mean(-1, keepdims=True)
        return (v - mu) / jnp.sqrt(var + EPS) * g + b

    x2 = ln(x, p["ln1_g"], p["ln1_b"])
    q = x2 @ p["wq"] + p["bq"]
    k = x2 @ p["wk"] + p["bk"]
    v = x2 @ p["wv"] + p["bv"]
    q = q.reshape(B, S, H, DH).transpose(0, 2, 1, 3)
    k = k.reshape(B, S, H, DH).transpose(0, 2, 1, 3)
    v = v.reshape(B, S, H, DH).transpose(0, 2, 1, 3)
    scores = jnp.einsum("bhqd,bhkd->bhqk", q / math.sqrt(DH), k)
    attn = jax.nn.softmax(scores, axis=-1)
    out = jnp.einsum("bhqk,bhkd->bhqd", attn, v)
    out = out.transpose(0, 2, 1, 3).reshape(B, S, D)
    out = out @ p["wo"] + p["bo"]
    x = x + out
    x2 = ln(x, p["ln2_g"], p["ln2_b"])
    ff = jnp.maximum(x2 @ p["w1"] + p["b1"], 0.0) @ p["w2"] + p["b2"]
    return x + ff


if __name__ == "__main__":
    key = jax.random.PRNGKey(0)
    kx, kp = jax.random.split(key)
    x = jax.random.normal(kx, (B, S, D), jnp.float32)
    params = init_params(kp)

    ref = reference(x, params)               # computed before the aliased kernel call
    out = transformer_encoder_layer(x, params)
    out = jax.block_until_ready(out)

    assert out.shape == (B, S, D)
    # Tolerance loosened from 1e-4 only because of pl.reciprocal(approx=True);
    # all matmuls stay f32 at these toy shapes (bf16 reserved for real sizes).
    assert jnp.allclose(out, ref, atol=2e-3, rtol=2e-3), "mismatch vs reference"

    print("KERNEL_OK")
</pallas_src>

<mosaic_0001>
module attributes {stable_mosaic.version = 11 : i64} {
  func.func @encoder_layer_kernel(%arg0: i32, %arg1: memref<1x8x32xf32, #tpu.memory_space<vmem>>, %arg2: memref<1x32xf32, #tpu.memory_space<vmem>>, %arg3: memref<1x32xf32, #tpu.memory_space<vmem>>, %arg4: memref<32x96xf32, #tpu.memory_space<vmem>>, %arg5: memref<1x96xf32, #tpu.memory_space<vmem>>, %arg6: memref<32x32xf32, #tpu.memory_space<vmem>>, %arg7: memref<1x32xf32, #tpu.memory_space<vmem>>, %arg8: memref<1x32xf32, #tpu.memory_space<vmem>>, %arg9: memref<1x32xf32, #tpu.memory_space<vmem>>, %arg10: memref<32x64xf32, #tpu.memory_space<vmem>>, %arg11: memref<1x64xf32, #tpu.memory_space<vmem>>, %arg12: memref<64x32xf32, #tpu.memory_space<vmem>>, %arg13: memref<1x32xf32, #tpu.memory_space<vmem>>, %arg14: memref<1x8x32xf32, #tpu.memory_space<vmem>>) attributes {dimension_semantics = [#tpu.dimension_semantics<parallel>], iteration_bounds = array<i64: 2>, scalar_prefetch = 0 : i64, scratch_operands = 0 : i64, tpu.core_type = #tpu.core_type<tc>, window_params = [{transform_indices = @transform_0, window_bounds = array<i64: 1, 8, 32>}, {pipeline_mode = #tpu.pipeline_mode<synchronous>, transform_indices = @transform_1, window_bounds = array<i64: 1, 32>}, {pipeline_mode = #tpu.pipeline_mode<synchronous>, transform_indices = @transform_2, window_bounds = array<i64: 1, 32>}, {pipeline_mode = #tpu.pipeline_mode<synchronous>, transform_indices = @transform_3, window_bounds = array<i64: 32, 96>}, {pipeline_mode = #tpu.pipeline_mode<synchronous>, transform_indices = @transform_4, window_bounds = array<i64: 1, 96>}, {pipeline_mode = #tpu.pipeline_mode<synchronous>, transform_indices = @transform_5, window_bounds = array<i64: 32, 32>}, {pipeline_mode = #tpu.pipeline_mode<synchronous>, transform_indices = @transform_6, window_bounds = array<i64: 1, 32>}, {pipeline_mode = #tpu.pipeline_mode<synchronous>, transform_indices = @transform_7, window_bounds = array<i64: 1, 32>}, {pipeline_mode = #tpu.pipeline_mode<synchronous>, transform_indices = @transform_8, window_bounds = array<i64: 1, 32>}, {pipeline_mode = #tpu.pipeline_mode<synchronous>, transform_indices = @transform_9, window_bounds = array<i64: 32, 64>}, {pipeline_mode = #tpu.pipeline_mode<synchronous>, transform_indices = @transform_10, window_bounds = array<i64: 1, 64>}, {pipeline_mode = #tpu.pipeline_mode<synchronous>, transform_indices = @transform_11, window_bounds = array<i64: 64, 32>}, {pipeline_mode = #tpu.pipeline_mode<synchronous>, transform_indices = @transform_12, window_bounds = array<i64: 1, 32>}, {transform_indices = @transform_13, window_bounds = array<i64: 1, 8, 32>}]} {
    %c0 = arith.constant 0 : index
    %c0_0 = arith.constant 0 : index
    %c0_1 = arith.constant 0 : index
    %0 = vector.load %arg1[%c0, %c0_0, %c0_1] : memref<1x8x32xf32, #tpu.memory_space<vmem>>, vector<1x8x32xf32>
    %1 = vector.shape_cast %0 : vector<1x8x32xf32> to vector<8x32xf32>
    %c0_2 = arith.constant 0 : index
    %c0_3 = arith.constant 0 : index
    %2 = vector.load %arg2[%c0_2, %c0_3] : memref<1x32xf32, #tpu.memory_space<vmem>>, vector<1x32xf32>
    %c0_4 = arith.constant 0 : index
    %c0_5 = arith.constant 0 : index
    %3 = vector.load %arg3[%c0_4, %c0_5] : memref<1x32xf32, #tpu.memory_space<vmem>>, vector<1x32xf32>
    %cst = arith.constant dense<0.000000e+00> : vector<8xf32>
    %4 = vector.multi_reduction <add>, %1, %cst [1] : vector<8x32xf32> to vector<8xf32>
    %5 = vector.shape_cast %4 : vector<8xf32> to vector<8x1xf32>
    %cst_6 = arith.constant 3.200000e+01 : f32
    %6 = vector.broadcast %cst_6 : f32 to vector<8x1xf32>
    %7 = arith.divf %5, %6 : vector<8x1xf32>
    %8 = vector.broadcast %7 : vector<8x1xf32> to vector<8x32xf32>
    %9 = arith.subf %1, %8 : vector<8x32xf32>
    %10 = arith.mulf %9, %9 : vector<8x32xf32>
    %cst_7 = arith.constant dense<0.000000e+00> : vector<8xf32>
    %11 = vector.multi_reduction <add>, %10, %cst_7 [1] : vector<8x32xf32> to vector<8xf32>
    %12 = vector.shape_cast %11 : vector<8xf32> to vector<8x1xf32>
    %cst_8 = arith.constant 3.200000e+01 : f32
    %13 = vector.broadcast %cst_8 : f32 to vector<8x1xf32>
    %14 = arith.divf %12, %13 : vector<8x1xf32>
    %15 = vector.broadcast %7 : vector<8x1xf32> to vector<8x32xf32>
    %16 = arith.subf %1, %15 : vector<8x32xf32>
    %cst_9 = arith.constant 9.99999974E-6 : f32
    %17 = vector.broadcast %cst_9 : f32 to vector<8x1xf32>
    %18 = arith.addf %14, %17 : vector<8x1xf32>
    %19 = math.rsqrt %18 : vector<8x1xf32>
    %20 = vector.broadcast %19 : vector<8x1xf32> to vector<8x32xf32>
    %21 = arith.mulf %16, %20 : vector<8x32xf32>
    %22 = vector.broadcast %2 : vector<1x32xf32> to vector<8x32xf32>
    %23 = arith.mulf %21, %22 : vector<8x32xf32>
    %24 = vector.broadcast %3 : vector<1x32xf32> to vector<8x32xf32>
    %25 = arith.addf %23, %24 : vector<8x32xf32>
    %c0_10 = arith.constant 0 : index
    %c0_11 = arith.constant 0 : index
    %26 = vector.load %arg4[%c0_10, %c0_11] : memref<32x96xf32, #tpu.memory_space<vmem>>, vector<32x96xf32>
    %cst_12 = arith.constant dense<0.000000e+00> : vector<8x96xf32>
    %27 = tpu.matmul %25, %26, %cst_12 {dimension_numbers = #tpu.dot_dimension_numbers<[1], [0], [0], [1], [0, 0, 1, 1], [], []>} : vector<8x32xf32>, vector<32x96xf32>, vector<8x96xf32> -> vector<8x96xf32>
    %c0_13 = arith.constant 0 : index
    %c0_14 = arith.constant 0 : index
    %28 = vector.load %arg5[%c0_13, %c0_14] : memref<1x96xf32, #tpu.memory_space<vmem>>, vector<1x96xf32>
    %29 = vector.broadcast %28 : vector<1x96xf32> to vector<8x96xf32>
    %30 = arith.addf %27, %29 : vector<8x96xf32>
    %31 = vector.shape_cast %30 : vector<8x96xf32> to vector<8x12x8xf32>
    %32 = tpu.transpose %31, [1, 0, 2] : vector<8x12x8xf32> -> vector<12x8x8xf32>
    %33 = vector.extract_strided_slice %32 {offsets = [0, 0, 0], sizes = [4, 8, 8], strides = [1, 1, 1]} : vector<12x8x8xf32> to vector<4x8x8xf32>
    %34 = vector.extract_strided_slice %32 {offsets = [4, 0, 0], sizes = [4, 8, 8], strides = [1, 1, 1]} : vector<12x8x8xf32> to vector<4x8x8xf32>
    %35 = vector.extract_strided_slice %32 {offsets = [8, 0, 0], sizes = [4, 8, 8], strides = [1, 1, 1]} : vector<12x8x8xf32> to vector<4x8x8xf32>
    "tpu.trace_start"() <{level = 10 : i32, message = "hqd,hkd->hqk"}> : () -> ()
    %cst_15 = arith.constant dense<0.000000e+00> : vector<4x8x8xf32>
    %36 = tpu.matmul %33, %34, %cst_15 {dimension_numbers = #tpu.dot_dimension_numbers<[2], [2], [1], [1], [0, 0, 0, 1, 1, 1], [0], [0]>} : vector<4x8x8xf32>, vector<4x8x8xf32>, vector<4x8x8xf32> -> vector<4x8x8xf32>
    "tpu.trace_stop"() : () -> ()
    %cst_16 = arith.constant dense<0xFF800000> : vector<4x8xf32>
    %37 = vector.multi_reduction <maximumf>, %36, %cst_16 [2] : vector<4x8x8xf32> to vector<4x8xf32>
    %38 = vector.shape_cast %37 : vector<4x8xf32> to vector<4x8x1xf32>
    %39 = vector.broadcast %38 : vector<4x8x1xf32> to vector<4x8x8xf32>
    %40 = arith.subf %36, %39 : vector<4x8x8xf32>
    %41 = math.exp %40 : vector<4x8x8xf32>
    %cst_17 = arith.constant dense<0.000000e+00> : vector<4x8xf32>
    %42 = vector.multi_reduction <add>, %41, %cst_17 [2] : vector<4x8x8xf32> to vector<4x8xf32>
    %43 = vector.shape_cast %42 : vector<4x8xf32> to vector<4x8x1xf32>
    "tpu.trace_start"() <{level = 10 : i32, message = "hqk,hkd->hqd"}> : () -> ()
    %cst_18 = arith.constant dense<0.000000e+00> : vector<4x8x8xf32>
    %44 = tpu.matmul %41, %35, %cst_18 {dimension_numbers = #tpu.dot_dimension_numbers<[2], [1], [1], [2], [0, 0, 0, 1, 1, 2], [0], [0]>} : vector<4x8x8xf32>, vector<4x8x8xf32>, vector<4x8x8xf32> -> vector<4x8x8xf32>
    "tpu.trace_stop"() : () -> ()
    %45 = tpu.reciprocal %43 {approx = true} : vector<4x8x1xf32> -> vector<4x8x1xf32>
    %46 = vector.broadcast %45 : vector<4x8x1xf32> to vector<4x8x8xf32>
    %47 = arith.mulf %44, %46 : vector<4x8x8xf32>
    %48 = tpu.transpose %47, [1, 0, 2] : vector<4x8x8xf32> -> vector<8x4x8xf32>
    %49 = vector.shape_cast %48 : vector<8x4x8xf32> to vector<8x32xf32>
    %c0_19 = arith.constant 0 : index
    %c0_20 = arith.constant 0 : index
    %50 = vector.load %arg6[%c0_19, %c0_20] : memref<32x32xf32, #tpu.memory_space<vmem>>, vector<32x32xf32>
    %cst_21 = arith.constant dense<0.000000e+00> : vector<8x32xf32>
    %51 = tpu.matmul %49, %50, %cst_21 {dimension_numbers = #tpu.dot_dimension_numbers<[1], [0], [0], [1], [0, 0, 1, 1], [], []>} : vector<8x32xf32>, vector<32x32xf32>, vector<8x32xf32> -> vector<8x32xf32>
    %c0_22 = arith.constant 0 : index
    %c0_23 = arith.constant 0 : index
    %52 = vector.load %arg7[%c0_22, %c0_23] : memref<1x32xf32, #tpu.memory_space<vmem>>, vector<1x32xf32>
    %53 = vector.broadcast %52 : vector<1x32xf32> to vector<8x32xf32>
    %54 = arith.addf %51, %53 : vector<8x32xf32>
    %55 = arith.addf %1, %54 : vector<8x32xf32>
    %c0_24 = arith.constant 0 : index
    %c0_25 = arith.constant 0 : index
    %56 = vector.load %arg8[%c0_24, %c0_25] : memref<1x32xf32, #tpu.memory_space<vmem>>, vector<1x32xf32>
    %c0_26 = arith.constant 0 : index
    %c0_27 = arith.constant 0 : index
    %57 = vector.load %arg9[%c0_26, %c0_27] : memref<1x32xf32, #tpu.memory_space<vmem>>, vector<1x32xf32>
    %cst_28 = arith.constant dense<0.000000e+00> : vector<8xf32>
    %58 = vector.multi_reduction <add>, %55, %cst_28 [1] : vector<8x32xf32> to vector<8xf32>
    %59 = vector.shape_cast %58 : vector<8xf32> to vector<8x1xf32>
    %cst_29 = arith.constant 3.200000e+01 : f32
    %60 = vector.broadcast %cst_29 : f32 to vector<8x1xf32>
    %61 = arith.divf %59, %60 : vector<8x1xf32>
    %62 = vector.broadcast %61 : vector<8x1xf32> to vector<8x32xf32>
    %63 = arith.subf %55, %62 : vector<8x32xf32>
    %64 = arith.mulf %63, %63 : vector<8x32xf32>
    %cst_30 = arith.constant dense<0.000000e+00> : vector<8xf32>
    %65 = vector.multi_reduction <add>, %64, %cst_30 [1] : vector<8x32xf32> to vector<8xf32>
    %66 = vector.shape_cast %65 : vector<8xf32> to vector<8x1xf32>
    %cst_31 = arith.constant 3.200000e+01 : f32
    %67 = vector.broadcast %cst_31 : f32 to vector<8x1xf32>
    %68 = arith.divf %66, %67 : vector<8x1xf32>
    %69 = vector.broadcast %61 : vector<8x1xf32> to vector<8x32xf32>
    %70 = arith.subf %55, %69 : vector<8x32xf32>
    %cst_32 = arith.constant 9.99999974E-6 : f32
    %71 = vector.broadcast %cst_32 : f32 to vector<8x1xf32>
    %72 = arith.addf %68, %71 : vector<8x1xf32>
    %73 = math.rsqrt %72 : vector<8x1xf32>
    %74 = vector.broadcast %73 : vector<8x1xf32> to vector<8x32xf32>
    %75 = arith.mulf %70, %74 : vector<8x32xf32>
    %76 = vector.broadcast %56 : vector<1x32xf32> to vector<8x32xf32>
    %77 = arith.mulf %75, %76 : vector<8x32xf32>
    %78 = vector.broadcast %57 : vector<1x32xf32> to vector<8x32xf32>
    %79 = arith.addf %77, %78 : vector<8x32xf32>
    %c0_33 = arith.constant 0 : index
    %c0_34 = arith.constant 0 : index
    %80 = vector.load %arg10[%c0_33, %c0_34] : memref<32x64xf32, #tpu.memory_space<vmem>>, vector<32x64xf32>
    %cst_35 = arith.constant dense<0.000000e+00> : vector<8x64xf32>
    %81 = tpu.matmul %79, %80, %cst_35 {dimension_numbers = #tpu.dot_dimension_numbers<[1], [0], [0], [1], [0, 0, 1, 1], [], []>} : vector<8x32xf32>, vector<32x64xf32>, vector<8x64xf32> -> vector<8x64xf32>
    %c0_36 = arith.constant 0 : index
    %c0_37 = arith.constant 0 : index
    %82 = vector.load %arg11[%c0_36, %c0_37] : memref<1x64xf32, #tpu.memory_space<vmem>>, vector<1x64xf32>
    %83 = vector.broadcast %82 : vector<1x64xf32> to vector<8x64xf32>
    %84 = arith.addf %81, %83 : vector<8x64xf32>
    %cst_38 = arith.constant 0.000000e+00 : f32
    %85 = vector.broadcast %cst_38 : f32 to vector<8x64xf32>
    %86 = arith.maximumf %84, %85 : vector<8x64xf32>
    %c0_39 = arith.constant 0 : index
    %c0_40 = arith.constant 0 : index
    %87 = vector.load %arg12[%c0_39, %c0_40] : memref<64x32xf32, #tpu.memory_space<vmem>>, vector<64x32xf32>
    %cst_41 = arith.constant dense<0.000000e+00> : vector<8x32xf32>
    %88 = tpu.matmul %86, %87, %cst_41 {dimension_numbers = #tpu.dot_dimension_numbers<[1], [0], [0], [1], [0, 0, 1, 1], [], []>} : vector<8x64xf32>, vector<64x32xf32>, vector<8x32xf32> -> vector<8x32xf32>
    %c0_42 = arith.constant 0 : index
    %c0_43 = arith.constant 0 : index
    %89 = vector.load %arg13[%c0_42, %c0_43] : memref<1x32xf32, #tpu.memory_space<vmem>>, vector<1x32xf32>
    %90 = vector.broadcast %89 : vector<1x32xf32> to vector<8x32xf32>
    %91 = arith.addf %88, %90 : vector<8x32xf32>
    %92 = arith.addf %55, %91 : vector<8x32xf32>
    %c0_44 = arith.constant 0 : index
    %c0_45 = arith.constant 0 : index
    %c0_46 = arith.constant 0 : index
    %93 = vector.load %arg14[%c0_44, %c0_45, %c0_46] : memref<1x8x32xf32, #tpu.memory_space<vmem>>, vector<1x8x32xf32>
    %94 = vector.shape_cast %93 : vector<1x8x32xf32> to vector<8x32xf32>
    %95 = vector.shape_cast %92 : vector<8x32xf32> to vector<1x8x32xf32>
    tpu.vector_store %arg14[%c0_44, %c0_45, %c0_46], %95 {strides = array<i32>} : memref<1x8x32xf32, #tpu.memory_space<vmem>>, vector<1x8x32xf32>,
    return
  }
  func.func @transform_0(%arg0: i32) -> (i32, i32, i32) {
    %c0_i32 = arith.constant 0 : i32
    %c0_i32_0 = arith.constant 0 : i32
    %c0_i32_1 = arith.constant 0 : i32
    return %arg0, %c0_i32, %c0_i32_0 : i32, i32, i32
  }
  func.func @transform_1(%arg0: i32) -> (i32, i32) {
    %c0_i32 = arith.constant 0 : i32
    %c0_i32_0 = arith.constant 0 : i32
    %c0_i32_1 = arith.constant 0 : i32
    return %c0_i32, %c0_i32_0 : i32, i32
  }
  func.func @transform_2(%arg0: i32) -> (i32, i32) {
    %c0_i32 = arith.constant 0 : i32
    %c0_i32_0 = arith.constant 0 : i32
    %c0_i32_1 = arith.constant 0 : i32
    return %c0_i32, %c0_i32_0 : i32, i32
  }
  func.func @transform_3(%arg0: i32) -> (i32, i32) {
    %c0_i32 = arith.constant 0 : i32
    %c0_i32_0 = arith.constant 0 : i32
    %c0_i32_1 = arith.constant 0 : i32
    return %c0_i32, %c0_i32_0 : i32, i32
  }
  func.func @transform_4(%arg0: i32) -> (i32, i32) {
    %c0_i32 = arith.constant 0 : i32
    %c0_i32_0 = arith.constant 0 : i32
    %c0_i32_1 = arith.constant 0 : i32
    return %c0_i32, %c0_i32_0 : i32, i32
  }
  func.func @transform_5(%arg0: i32) -> (i32, i32) {
    %c0_i32 = arith.constant 0 : i32
    %c0_i32_0 = arith.constant 0 : i32
    %c0_i32_1 = arith.constant 0 : i32
    return %c0_i32, %c0_i32_0 : i32, i32
  }
  func.func @transform_6(%arg0: i32) -> (i32, i32) {
    %c0_i32 = arith.constant 0 : i32
    %c0_i32_0 = arith.constant 0 : i32
    %c0_i32_1 = arith.constant 0 : i32
    return %c0_i32, %c0_i32_0 : i32, i32
  }
  func.func @transform_7(%arg0: i32) -> (i32, i32) {
    %c0_i32 = arith.constant 0 : i32
    %c0_i32_0 = arith.constant 0 : i32
    %c0_i32_1 = arith.constant 0 : i32
    return %c0_i32, %c0_i32_0 : i32, i32
  }
  func.func @transform_8(%arg0: i32) -> (i32, i32) {
    %c0_i32 = arith.constant 0 : i32
    %c0_i32_0 = arith.constant 0 : i32
    %c0_i32_1 = arith.constant 0 : i32
    return %c0_i32, %c0_i32_0 : i32, i32
  }
  func.func @transform_9(%arg0: i32) -> (i32, i32) {
    %c0_i32 = arith.constant 0 : i32
    %c0_i32_0 = arith.constant 0 : i32
    %c0_i32_1 = arith.constant 0 : i32
    return %c0_i32, %c0_i32_0 : i32, i32
  }
  func.func @transform_10(%arg0: i32) -> (i32, i32) {
    %c0_i32 = arith.constant 0 : i32
    %c0_i32_0 = arith.constant 0 : i32
    %c0_i32_1 = arith.constant 0 : i32
    return %c0_i32, %c0_i32_0 : i32, i32
  }
  func.func @transform_11(%arg0: i32) -> (i32, i32) {
    %c0_i32 = arith.constant 0 : i32
    %c0_i32_0 = arith.constant 0 : i32
    %c0_i32_1 = arith.constant 0 : i32
    return %c0_i32, %c0_i32_0 : i32, i32
  }
  func.func @transform_12(%arg0: i32) -> (i32, i32) {
    %c0_i32 = arith.constant 0 : i32
    %c0_i32_0 = arith.constant 0 : i32
    %c0_i32_1 = arith.constant 0 : i32
    return %c0_i32, %c0_i32_0 : i32, i32
  }
  func.func @transform_13(%arg0: i32) -> (i32, i32, i32) {
    %c0_i32 = arith.constant 0 : i32
    %c0_i32_0 = arith.constant 0 : i32
    %c0_i32_1 = arith.constant 0 : i32
    return %arg0, %c0_i32, %c0_i32_0 : i32, i32, i32
  }
}

</mosaic_0001>

<llo_original>
// kernel: tpu_custom_call.1
$region0: #{tpu_custom_call.1}
  #allocation0 [shape = 'u32[]', space=smem, size = 0x4, offset = 0x4, fixed_abs, tag = 'smem constant byte address 0x4 - core index']
  #allocation1 [shape = 'u32[72,128]{1,0:T(1,128)}', space=vmem, size = 0x9000, scoped, tag = 'internal scratch']
  %s0 = inlined_call_operand.hbm [shape: f32[2,8,32], index: 0, kind: input, shape index: {}, may-alias: {0,13}]
  %s1 = inlined_call_operand.vmem [shape: f32[1,32], index: 1, kind: input, shape index: {}]
  %s2 = inlined_call_operand.vmem [shape: f32[1,32], index: 2, kind: input, shape index: {}]
  %s3 = inlined_call_operand.vmem [shape: f32[32,96], index: 3, kind: input, shape index: {}]
  %s4 = inlined_call_operand.vmem [shape: f32[1,96], index: 4, kind: input, shape index: {}]
  %s5 = inlined_call_operand.vmem [shape: f32[32,32], index: 5, kind: input, shape index: {}]
  %s6 = inlined_call_operand.vmem [shape: f32[1,32], index: 6, kind: input, shape index: {}]
  %s7 = inlined_call_operand.vmem [shape: f32[1,32], index: 7, kind: input, shape index: {}]
  %s8 = inlined_call_operand.vmem [shape: f32[1,32], index: 8, kind: input, shape index: {}]
  %s9 = inlined_call_operand.vmem [shape: f32[32,64], index: 9, kind: input, shape index: {}]
  %s10 = inlined_call_operand.vmem [shape: f32[1,64], index: 10, kind: input, shape index: {}]
  %s11 = inlined_call_operand.vmem [shape: f32[64,32], index: 11, kind: input, shape index: {}]
  %s12 = inlined_call_operand.vmem [shape: f32[1,32], index: 12, kind: input, shape index: {}]
  %s13 = inlined_call_operand.hbm [shape: f32[2,8,32], index: 13, kind: output, shape index: {}, may-alias: {0,13}]
  %s14 = sld [smem:[#allocation0]]
  $region89: #{tpu_custom_call.1} parent=0
    _
  %s16 = ssub.s32 1, %s14
  %s17 = scalar_select 0, %s16, %s14
  $region1: #{tpu_custom_call.1} parent=0
    #allocation2 [shape = 'u8[8192]{0}', space=vmem, size = 0x2000, scoped, tag = 'input window, operand 0']
    #allocation3 [shape = 's32[2]{0}', space=sflag, size = 0x8, scoped, tag = 'scoped memory for tpu_custom_call.1']
    #allocation4 [shape = 's32[2]{0}', space=sflag, size = 0x8, scoped, tag = 'scoped memory for tpu_custom_call.1']
    #allocation5 [shape = 'u8[8192]{0}', space=vmem, size = 0x2000, scoped, tag = 'output window, operand 0']
    %18 = vsyncpa [#allocation3], 0
    %s19 = scalar_lea.sflag [#allocation3], 1
    %20 = vsyncpa %s19, 0
    %21 = vsyncpa [#allocation4], 0
    %s22 = scalar_lea.sflag [#allocation4], 1
    %23 = vsyncpa %s22, 0
    loop: start=0, step=1, limit=4
    $region2: #{tpu_custom_call.1} parent=1 // loop_pre_header
      _
    $region3: #{tpu_custom_call.1} parent=1 // loop_header
      %s25 = sphi 0, %s29
      %p26 = scmp.ge.s32.totalorder %s25, 4
      %s35 = sphi 0, %s37
      %s38 = sphi 0, %s35
      %s39 = sphi 0, %s38
      %s55 = sphi 0, %s39
      %s59 = sphi 0, %s59
      %s61 = sphi 0, %s59
      %s62 = sphi 0, %s61
      %s76 = sphi 0, %s62
      %s80 = sphi 0, %s80
      %s82 = sphi 0, %s80
      %s83 = sphi 0, %s82
      %s97 = sphi 0, %s83
      %s101 = sphi 0, %s101
      %s103 = sphi 0, %s101
      %s104 = sphi 0, %s103
      %s118 = sphi 0, %s104
      %s122 = sphi 0, %s122
      %s124 = sphi 0, %s122
      %s125 = sphi 0, %s124
      %s139 = sphi 0, %s125
      %s143 = sphi 0, %s143
      %s145 = sphi 0, %s143
      %s146 = sphi 0, %s145
      %s160 = sphi 0, %s146
      %s164 = sphi 0, %s164
      %s166 = sphi 0, %s164
      %s167 = sphi 0, %s166
      %s181 = sphi 0, %s167
      %s185 = sphi 0, %s185
      %s187 = sphi 0, %s185
      %s188 = sphi 0, %s187
      %s202 = sphi 0, %s188
      %s206 = sphi 0, %s206
      %s208 = sphi 0, %s206
      %s209 = sphi 0, %s208
      %s223 = sphi 0, %s209
      %s227 = sphi 0, %s227
      %s229 = sphi 0, %s227
      %s230 = sphi 0, %s229
      %s244 = sphi 0, %s230
      %s248 = sphi 0, %s248
      %s250 = sphi 0, %s248
      %s251 = sphi 0, %s250
      %s265 = sphi 0, %s251
      %s269 = sphi 0, %s269
      %s271 = sphi 0, %s269
      %s272 = sphi 0, %s271
      %s286 = sphi 0, %s272
      %s290 = sphi 0, %s290
      %s292 = sphi 0, %s290
      %s293 = sphi 0, %s292
      %s307 = sphi 0, %s293
      %s313 = sphi 0, %s315
      %s316 = sphi 0, %s313
      %s317 = sphi 0, %s316
      %s333 = sphi 0, %s317
    $region4: #{tpu_custom_call.1} parent=1 // loop_header_branch
      %28 = sbr.rel (%p26) target = $region8
    $region5: #{tpu_custom_call.1} parent=1 // loop_body
      %s30 = ssub.s32 %s25, 1
      %s31 = ssub.s32 %s25, 2
      %s32 = sadd.s32 %s25, 1
      %s33 = ssub.s32 %s25, %s32
      %p34 = scmp.eq.s32.totalorder %s33, 0
      %s36 = sadd.s32 %s35, 1
      %s37 = scalar_select %p34, %s35, %s36
      %p40 = pneg %p34
      %p41 = scmp.eq.s32.totalorder %s25, 1
      %p42 = por %p40, %p41
      %p43 = scmp.ne.s32.totalorder %s35, %s38
      %p44 = scmp.eq.s32.totalorder %s25, 0
      %p45 = por %p43, %p44
      %p46 = scmp.ne.s32.totalorder %s35, %s38
      %p47 = scmp.eq.s32.totalorder %s30, 1
      %p48 = por %p46, %p47
      %p49 = scmp.ne.s32.totalorder %s38, %s39
      %p50 = scmp.eq.s32.totalorder %s30, 0
      %p51 = por %p49, %p50
      %p52 = scmp.ne.s32.totalorder %s38, %s39
      %p53 = scmp.eq.s32.totalorder %s31, 1
      %p54 = por %p52, %p53
      %p56 = scmp.ne.s32.totalorder %s39, %s55
      %p57 = scmp.eq.s32.totalorder %s31, 0
      %p58 = por %p56, %p57
      %s60 = sadd.s32 %s59, 1
      %p63 = scmp.eq.s32.totalorder %s25, 1
      %p64 = scmp.ne.s32.totalorder %s59, %s61
      %p65 = scmp.eq.s32.totalorder %s25, 0
      %p66 = por %p64, %p65
      %p67 = scmp.ne.s32.totalorder %s59, %s61
      %p68 = scmp.eq.s32.totalorder %s30, 1
      %p69 = por %p67, %p68
      %p70 = scmp.ne.s32.totalorder %s61, %s62
      %p71 = scmp.eq.s32.totalorder %s30, 0
      %p72 = por %p70, %p71
      %p73 = scmp.ne.s32.totalorder %s61, %s62
      %p74 = scmp.eq.s32.totalorder %s31, 1
      %p75 = por %p73, %p74
      %p77 = scmp.ne.s32.totalorder %s62, %s76
      %p78 = scmp.eq.s32.totalorder %s31, 0
      %p79 = por %p77, %p78
      %s81 = sadd.s32 %s80, 1
      %p84 = scmp.eq.s32.totalorder %s25, 1
      %p85 = scmp.ne.s32.totalorder %s80, %s82
      %p86 = scmp.eq.s32.totalorder %s25, 0
      %p87 = por %p85, %p86
      %p88 = scmp.ne.s32.totalorder %s80, %s82
      %p89 = scmp.eq.s32.totalorder %s30, 1
      %p90 = por %p88, %p89
      %p91 = scmp.ne.s32.totalorder %s82, %s83
      %p92 = scmp.eq.s32.totalorder %s30, 0
      %p93 = por %p91, %p92
      %p94 = scmp.ne.s32.totalorder %s82, %s83
      %p95 = scmp.eq.s32.totalorder %s31, 1
      %p96 = por %p94, %p95
      %p98 = scmp.ne.s32.totalorder %s83, %s97
      %p99 = scmp.eq.s32.totalorder %s31, 0
      %p100 = por %p98, %p99
      %s102 = sadd.s32 %s101, 1
      %p105 = scmp.eq.s32.totalorder %s25, 1
      %p106 = scmp.ne.s32.totalorder %s101, %s103
      %p107 = scmp.eq.s32.totalorder %s25, 0
      %p108 = por %p106, %p107
      %p109 = scmp.ne.s32.totalorder %s101, %s103
      %p110 = scmp.eq.s32.totalorder %s30, 1
      %p111 = por %p109, %p110
      %p112 = scmp.ne.s32.totalorder %s103, %s104
      %p113 = scmp.eq.s32.totalorder %s30, 0
      %p114 = por %p112, %p113
      %p115 = scmp.ne.s32.totalorder %s103, %s104
      %p116 = scmp.eq.s32.totalorder %s31, 1
      %p117 = por %p115, %p116
      %p119 = scmp.ne.s32.totalorder %s104, %s118
      %p120 = scmp.eq.s32.totalorder %s31, 0
      %p121 = por %p119, %p120
      %s123 = sadd.s32 %s122, 1
      %p126 = scmp.eq.s32.totalorder %s25, 1
      %p127 = scmp.ne.s32.totalorder %s122, %s124
      %p128 = scmp.eq.s32.totalorder %s25, 0
      %p129 = por %p127, %p128
      %p130 = scmp.ne.s32.totalorder %s122, %s124
      %p131 = scmp.eq.s32.totalorder %s30, 1
      %p132 = por %p130, %p131
      %p133 = scmp.ne.s32.totalorder %s124, %s125
      %p134 = scmp.eq.s32.totalorder %s30, 0
      %p135 = por %p133, %p134
      %p136 = scmp.ne.s32.totalorder %s124, %s125
      %p137 = scmp.eq.s32.totalorder %s31, 1
      %p138 = por %p136, %p137
      %p140 = scmp.ne.s32.totalorder %s125, %s139
      %p141 = scmp.eq.s32.totalorder %s31, 0
      %p142 = por %p140, %p141
      %s144 = sadd.s32 %s143, 1
      %p147 = scmp.eq.s32.totalorder %s25, 1
      %p148 = scmp.ne.s32.totalorder %s143, %s145
      %p149 = scmp.eq.s32.totalorder %s25, 0
      %p150 = por %p148, %p149
      %p151 = scmp.ne.s32.totalorder %s143, %s145
      %p152 = scmp.eq.s32.totalorder %s30, 1
      %p153 = por %p151, %p152
      %p154 = scmp.ne.s32.totalorder %s145, %s146
      %p155 = scmp.eq.s32.totalorder %s30, 0
      %p156 = por %p154, %p155
      %p157 = scmp.ne.s32.totalorder %s145, %s146
      %p158 = scmp.eq.s32.totalorder %s31, 1
      %p159 = por %p157, %p158
      %p161 = scmp.ne.s32.totalorder %s146, %s160
      %p162 = scmp.eq.s32.totalorder %s31, 0
      %p163 = por %p161, %p162
      %s165 = sadd.s32 %s164, 1
      %p168 = scmp.eq.s32.totalorder %s25, 1
      %p169 = scmp.ne.s32.totalorder %s164, %s166
      %p170 = scmp.eq.s32.totalorder %s25, 0
      %p171 = por %p169, %p170
      %p172 = scmp.ne.s32.totalorder %s164, %s166
      %p173 = scmp.eq.s32.totalorder %s30, 1
      %p174 = por %p172, %p173
      %p175 = scmp.ne.s32.totalorder %s166, %s167
      %p176 = scmp.eq.s32.totalorder %s30, 0
      %p177 = por %p175, %p176
      %p178 = scmp.ne.s32.totalorder %s166, %s167
      %p179 = scmp.eq.s32.totalorder %s31, 1
      %p180 = por %p178, %p179
      %p182 = scmp.ne.s32.totalorder %s167, %s181
      %p183 = scmp.eq.s32.totalorder %s31, 0
      %p184 = por %p182, %p183
      %s186 = sadd.s32 %s185, 1
      %p189 = scmp.eq.s32.totalorder %s25, 1
      %p190 = scmp.ne.s32.totalorder %s185, %s187
      %p191 = scmp.eq.s32.totalorder %s25, 0
      %p192 = por %p190, %p191
      %p193 = scmp.ne.s32.totalorder %s185, %s187
      %p194 = scmp.eq.s32.totalorder %s30, 1
      %p195 = por %p193, %p194
      %p196 = scmp.ne.s32.totalorder %s187, %s188
      %p197 = scmp.eq.s32.totalorder %s30, 0
      %p198 = por %p196, %p197
      %p199 = scmp.ne.s32.totalorder %s187, %s188
      %p200 = scmp.eq.s32.totalorder %s31, 1
      %p201 = por %p199, %p200
      %p203 = scmp.ne.s32.totalorder %s188, %s202
      %p204 = scmp.eq.s32.totalorder %s31, 0
      %p205 = por %p203, %p204
      %s207 = sadd.s32 %s206, 1
      %p210 = scmp.eq.s32.totalorder %s25, 1
      %p211 = scmp.ne.s32.totalorder %s206, %s208
      %p212 = scmp.eq.s32.totalorder %s25, 0
      %p213 = por %p211, %p212
      %p214 = scmp.ne.s32.totalorder %s206, %s208
      %p215 = scmp.eq.s32.totalorder %s30, 1
      %p216 = por %p214, %p215
      %p217 = scmp.ne.s32.totalorder %s208, %s209
      %p218 = scmp.eq.s32.totalorder %s30, 0
      %p219 = por %p217, %p218
      %p220 = scmp.ne.s32.totalorder %s208, %s209
      %p221 = scmp.eq.s32.totalorder %s31, 1
      %p222 = por %p220, %p221
      %p224 = scmp.ne.s32.totalorder %s209, %s223
      %p225 = scmp.eq.s32.totalorder %s31, 0
      %p226 = por %p224, %p225
      %s228 = sadd.s32 %s227, 1
      %p231 = scmp.eq.s32.totalorder %s25, 1
      %p232 = scmp.ne.s32.totalorder %s227, %s229
      %p233 = scmp.eq.s32.totalorder %s25, 0
      %p234 = por %p232, %p233
      %p235 = scmp.ne.s32.totalorder %s227, %s229
      %p236 = scmp.eq.s32.totalorder %s30, 1
      %p237 = por %p235, %p236
      %p238 = scmp.ne.s32.totalorder %s229, %s230
      %p239 = scmp.eq.s32.totalorder %s30, 0
      %p240 = por %p238, %p239
      %p241 = scmp.ne.s32.totalorder %s229, %s230
      %p242 = scmp.eq.s32.totalorder %s31, 1
      %p243 = por %p241, %p242
      %p245 = scmp.ne.s32.totalorder %s230, %s244
      %p246 = scmp.eq.s32.totalorder %s31, 0
      %p247 = por %p245, %p246
      %s249 = sadd.s32 %s248, 1
      %p252 = scmp.eq.s32.totalorder %s25, 1
      %p253 = scmp.ne.s32.totalorder %s248, %s250
      %p254 = scmp.eq.s32.totalorder %s25, 0
      %p255 = por %p253, %p254
      %p256 = scmp.ne.s32.totalorder %s248, %s250
      %p257 = scmp.eq.s32.totalorder %s30, 1
      %p258 = por %p256, %p257
      %p259 = scmp.ne.s32.totalorder %s250, %s251
      %p260 = scmp.eq.s32.totalorder %s30, 0
      %p261 = por %p259, %p260
      %p262 = scmp.ne.s32.totalorder %s250, %s251
      %p263 = scmp.eq.s32.totalorder %s31, 1
      %p264 = por %p262, %p263
      %p266 = scmp.ne.s32.totalorder %s251, %s265
      %p267 = scmp.eq.s32.totalorder %s31, 0
      %p268 = por %p266, %p267
      %s270 = sadd.s32 %s269, 1
      %p273 = scmp.eq.s32.totalorder %s25, 1
      %p274 = scmp.ne.s32.totalorder %s269, %s271
      %p275 = scmp.eq.s32.totalorder %s25, 0
      %p276 = por %p274, %p275
      %p277 = scmp.ne.s32.totalorder %s269, %s271
      %p278 = scmp.eq.s32.totalorder %s30, 1
      %p279 = por %p277, %p278
      %p280 = scmp.ne.s32.totalorder %s271, %s272
      %p281 = scmp.eq.s32.totalorder %s30, 0
      %p282 = por %p280, %p281
      %p283 = scmp.ne.s32.totalorder %s271, %s272
      %p284 = scmp.eq.s32.totalorder %s31, 1
      %p285 = por %p283, %p284
      %p287 = scmp.ne.s32.totalorder %s272, %s286
      %p288 = scmp.eq.s32.totalorder %s31, 0
      %p289 = por %p287, %p288
      %s291 = sadd.s32 %s290, 1
      %p294 = scmp.eq.s32.totalorder %s25, 1
      %p295 = scmp.ne.s32.totalorder %s290, %s292
      %p296 = scmp.eq.s32.totalorder %s25, 0
      %p297 = por %p295, %p296
      %p298 = scmp.ne.s32.totalorder %s290, %s292
      %p299 = scmp.eq.s32.totalorder %s30, 1
      %p300 = por %p298, %p299
      %p301 = scmp.ne.s32.totalorder %s292, %s293
      %p302 = scmp.eq.s32.totalorder %s30, 0
      %p303 = por %p301, %p302
      %p304 = scmp.ne.s32.totalorder %s292, %s293
      %p305 = scmp.eq.s32.totalorder %s31, 1
      %p306 = por %p304, %p305
      %p308 = scmp.ne.s32.totalorder %s293, %s307
      %p309 = scmp.eq.s32.totalorder %s31, 0
      %p310 = por %p308, %p309
      %s311 = ssub.s32 %s25, %s32
      %p312 = scmp.eq.s32.totalorder %s311, 0
      %s314 = sadd.s32 %s313, 1
      %s315 = scalar_select %p312, %s313, %s314
      %p318 = pneg %p312
      %p319 = scmp.eq.s32.totalorder %s25, 1
      %p320 = por %p318, %p319
      %p321 = scmp.ne.s32.totalorder %s313, %s316
      %p322 = scmp.eq.s32.totalorder %s25, 0
      %p323 = por %p321, %p322
      %p324 = scmp.ne.s32.totalorder %s313, %s316
      %p325 = scmp.eq.s32.totalorder %s30, 1
      %p326 = por %p324, %p325
      %p327 = scmp.ne.s32.totalorder %s316, %s317
      %p328 = scmp.eq.s32.totalorder %s30, 0
      %p329 = por %p327, %p328
      %p330 = scmp.ne.s32.totalorder %s316, %s317
      %p331 = scmp.eq.s32.totalorder %s31, 1
      %p332 = por %p330, %p331
      %p334 = scmp.ne.s32.totalorder %s317, %s333
      %p335 = scmp.eq.s32.totalorder %s31, 0
      %p336 = por %p334, %p335
      %p337 = scmp.le.s32.totalorder 1, %s25
      %p338 = scmp.lt.s32.totalorder %s25, 3
      %p339 = pnand %p337, %p338
      %p340 = pneg %p339
      // Predicated region
      $region9: #{tpu_custom_call.1} parent=5 // pred_check
        _
      $region10: #{tpu_custom_call.1} parent=5 // pred_check_branch
        %342 = sbr.rel (%p339) target = $region12
      $region11: #{tpu_custom_call.1} parent=5 // pred_region
        %s343 = ssub.s32 %s25, 1
        // Predicated region
        $region13: #{tpu_custom_call.1} parent=11 // pred_check
          %p344 = pneg %p72
        $region14: #{tpu_custom_call.1} parent=11 // pred_check_branch
          %346 = sbr.rel (%p344) target = $region16
        $region15: #{tpu_custom_call.1} parent=11 // pred_region
          _
        $region16: #{tpu_custom_call.1} parent=11 // pred_fallthru
          _
        // Predicated region
        $region17: #{tpu_custom_call.1} parent=11 // pred_check
          %p347 = pneg %p93
        $region18: #{tpu_custom_call.1} parent=11 // pred_check_branch
          %349 = sbr.rel (%p347) target = $region20
        $region19: #{tpu_custom_call.1} parent=11 // pred_region
          _
        $region20: #{tpu_custom_call.1} parent=11 // pred_fallthru
          _
        // Predicated region
        $region21: #{tpu_custom_call.1} parent=11 // pred_check
          %p350 = pneg %p114
        $region22: #{tpu_custom_call.1} parent=11 // pred_check_branch
          %352 = sbr.rel (%p350) target = $region24
        $region23: #{tpu_custom_call.1} parent=11 // pred_region
          _
        $region24: #{tpu_custom_call.1} parent=11 // pred_fallthru
          _
        // Predicated region
        $region25: #{tpu_custom_call.1} parent=11 // pred_check
          %p353 = pneg %p135
        $region26: #{tpu_custom_call.1} parent=11 // pred_check_branch
          %355 = sbr.rel (%p353) target = $region28
        $region27: #{tpu_custom_call.1} parent=11 // pred_region
          _
        $region28: #{tpu_custom_call.1} parent=11 // pred_fallthru
          _
        // Predicated region
        $region29: #{tpu_custom_call.1} parent=11 // pred_check
          %p356 = pneg %p156
        $region30: #{tpu_custom_call.1} parent=11 // pred_check_branch
          %358 = sbr.rel (%p356) target = $region32
        $region31: #{tpu_custom_call.1} parent=11 // pred_region
          _
        $region32: #{tpu_custom_call.1} parent=11 // pred_fallthru
          _
        // Predicated region
        $region33: #{tpu_custom_call.1} parent=11 // pred_check
          %p359 = pneg %p177
        $region34: #{tpu_custom_call.1} parent=11 // pred_check_branch
          %361 = sbr.rel (%p359) target = $region36
        $region35: #{tpu_custom_call.1} parent=11 // pred_region
          _
        $region36: #{tpu_custom_call.1} parent=11 // pred_fallthru
          _
        // Predicated region
        $region37: #{tpu_custom_call.1} parent=11 // pred_check
          %p362 = pneg %p198
        $region38: #{tpu_custom_call.1} parent=11 // pred_check_branch
          %364 = sbr.rel (%p362) target = $region40
        $region39: #{tpu_custom_call.1} parent=11 // pred_region
          _
        $region40: #{tpu_custom_call.1} parent=11 // pred_fallthru
          _
        // Predicated region
        $region41: #{tpu_custom_call.1} parent=11 // pred_check
          %p365 = pneg %p219
        $region42: #{tpu_custom_call.1} parent=11 // pred_check_branch
          %367 = sbr.rel (%p365) target = $region44
        $region43: #{tpu_custom_call.1} parent=11 // pred_region
          _
        $region44: #{tpu_custom_call.1} parent=11 // pred_fallthru
          _
        // Predicated region
        $region45: #{tpu_custom_call.1} parent=11 // pred_check
          %p368 = pneg %p240
        $region46: #{tpu_custom_call.1} parent=11 // pred_check_branch
          %370 = sbr.rel (%p368) target = $region48
        $region47: #{tpu_custom_call.1} parent=11 // pred_region
          _
        $region48: #{tpu_custom_call.1} parent=11 // pred_fallthru
          _
        // Predicated region
        $region49: #{tpu_custom_call.1} parent=11 // pred_check
          %p371 = pneg %p261
        $region50: #{tpu_custom_call.1} parent=11 // pred_check_branch
          %373 = sbr.rel (%p371) target = $region52
        $region51: #{tpu_custom_call.1} parent=11 // pred_region
          _
        $region52: #{tpu_custom_call.1} parent=11 // pred_fallthru
          _
        // Predicated region
        $region53: #{tpu_custom_call.1} parent=11 // pred_check
          %p374 = pneg %p282
        $region54: #{tpu_custom_call.1} parent=11 // pred_check_branch
          %376 = sbr.rel (%p374) target = $region56
        $region55: #{tpu_custom_call.1} parent=11 // pred_region
          _
        $region56: #{tpu_custom_call.1} parent=11 // pred_fallthru
          _
        // Predicated region
        $region57: #{tpu_custom_call.1} parent=11 // pred_check
          %p377 = pneg %p303
        $region58: #{tpu_custom_call.1} parent=11 // pred_check_branch
          %379 = sbr.rel (%p377) target = $region60
        $region59: #{tpu_custom_call.1} parent=11 // pred_region
          _
        $region60: #{tpu_custom_call.1} parent=11 // pred_fallthru
          _
      $region12: #{tpu_custom_call.1} parent=5 // pred_fallthru
        _
      %p380 = scmp.lt.s32.totalorder %s25, 2
      // Predicated region
      $region61: #{tpu_custom_call.1} parent=5 // pred_check
        %p381 = pneg %p380
      $region62: #{tpu_custom_call.1} parent=5 // pred_check_branch
        %383 = sbr.rel (%p381) target = $region64
      $region63: #{tpu_custom_call.1} parent=5 // pred_region
        // Predicated region
        $region65: #{tpu_custom_call.1} parent=63 // pred_check
          %p384 = pneg %p45
        $region66: #{tpu_custom_call.1} parent=63 // pred_check_branch
          %386 = sbr.rel (%p384) target = $region68
        $region67: #{tpu_custom_call.1} parent=63 // pred_region
          %s387 = sand.u32 %s35, 1
          %s388 = scalar_lea.sflag [#allocation3], %s387
          %s389 = sand.u32 %s35, 1
          %s390 = smul.addr %s389, 8
          %s391 = scalar_lea.vmem [#allocation2], %s390
          %393 = vsyncadd %s388, 0
          %s394 = smul.addr %s25, 8
          %s395 = scalar_lea.hbm %s0, %s394
          %s397 = sshll.u32 %s395, 4
          %s398 = int_to_ptr.hbm [resolvable:$true] %s397
          %s399 = sshll.u32 %s391, 4
          %s400 = int_to_ptr.vmem [resolvable:$true] %s399
          %402 = dma.hbm_to_vmem [thread:$0]  %s398, 128, %s400, %s388
        $region68: #{tpu_custom_call.1} parent=63 // pred_fallthru
          _
      $region64: #{tpu_custom_call.1} parent=5 // pred_fallthru
        _
      %p403 = scmp.le.s32.totalorder 1, %s25
      %p404 = scmp.lt.s32.totalorder %s25, 3
      %p405 = pnand %p403, %p404
      %p406 = pneg %p405
      // Predicated region
      $region69: #{tpu_custom_call.1} parent=5 // pred_check
        _
      $region70: #{tpu_custom_call.1} parent=5 // pred_check_branch
        %408 = sbr.rel (%p405) target = $region72
      $region71: #{tpu_custom_call.1} parent=5 // pred_region
        %s409 = ssub.s32 %s25, 1
        %s410 = sand.u32 %s38, 1
        %s411 = scalar_lea.sflag [#allocation3], %s410
        %s412 = sand.u32 %s38, 1
        %s413 = smul.addr %s412, 8
        %s414 = scalar_lea.vmem [#allocation2], %s413
        // Predicated region
        $region73: #{tpu_custom_call.1} parent=71 // pred_check
          %p415 = pneg %p51
        $region74: #{tpu_custom_call.1} parent=71 // pred_check_branch
          %417 = sbr.rel (%p415) target = $region76
        $region75: #{tpu_custom_call.1} parent=71 // pred_region
          %419 = dma.done %s411, 128
        $region76: #{tpu_custom_call.1} parent=71 // pred_fallthru
          _
        %s420 = sand.u32 %s38, 1
        %s421 = scalar_lea.sflag [#allocation3], %s420
        %s422 = sand.u32 %s38, 1
        %s423 = smul.addr %s422, 8
        %s424 = scalar_lea.vmem [#allocation2], %s423
        %p425 = pneg %p51
        %p426 = pneg %p48
        %p427 = pneg %p72
        %p428 = pneg %p69
        %p429 = pneg %p93
        %p430 = pneg %p90
        %p431 = pneg %p114
        %p432 = pneg %p111
        %p433 = pneg %p135
        %p434 = pneg %p132
        %p435 = pneg %p156
        %p436 = pneg %p153
        %p437 = pneg %p177
        %p438 = pneg %p174
        %p439 = pneg %p198
        %p440 = pneg %p195
        %p441 = pneg %p219
        %p442 = pneg %p216
        %p443 = pneg %p240
        %p444 = pneg %p237
        %p445 = pneg %p261
        %p446 = pneg %p258
        %p447 = pneg %p282
        %p448 = pneg %p279
        %p449 = pneg %p303
        %p450 = pneg %p300
        %p451 = pneg %p329
        %p452 = pneg %p326
        %s453 = sand.u32 %s316, 1
        %s454 = scalar_lea.sflag [#allocation4], %s453
        %s455 = sand.u32 %s316, 1
        %s456 = smul.addr %s455, 8
        %s457 = scalar_lea.vmem [#allocation5], %s456
        %v458 = vld [vmem:[%s414] sm:$0xff]
        %v459 = vld [vmem:[%s1] sm:$0x1]
        %v460 = vld [vmem:[%s2] sm:$0x1]
        %vm461 = vcmask 261120
        %v462 = vsel %vm461, %v458, 0.0
        %463 = vadd.xlane.f32.xlu0 %v462
        %v464 = vpop.xlane.xlu0 %463
        %v465 = vrcp.pop 32.0
        %v466 = vmul.f32 32.0, %v465
        %v467 = vsub.f32 1.0, %v466
        %v468 = vmul.f32 %v465, %v467
        %v469 = vadd.f32 %v465, %v468
        %vm470 = vweird.f32 %v465
        %v471 = vsel %vm470, %v465, %v469
        %v472 = vmul.f32 %v464, %v471
        %v473 = vsub.f32 %v458, %v472
        %v474 = vmul.f32 %v473, %v473
        %v475 = vsel %vm461, %v474, 0.0
        %476 = vadd.xlane.f32.xlu0 %v475
        %v477 = vpop.xlane.xlu0 %476
        %v478 = vmul.f32 %v477, %v471
        %v479 = vadd.f32 %v478, 1e-05
        %v480 = vrsqrt.pop %v479
        %v481 = vmul.f32 %v480, %v479
        %v482 = vmul.f32 %v481, %v480
        %v483 = vmul.f32 0.5, %v482
        %v484 = vsub.f32 1.5, %v483
        %v485 = vmul.f32 %v480, %v484
        %vm486 = vweird.f32 %v479
        %vm487 = vweird.f32 %v480
        %vm488 = vmor %vm486, %vm487
        %v489 = vsel %vm488, %v480, %v485
        %v490 = vmul.f32 %v473, %v489
        %v492 = vperm.slane %v459, 0
        %v494 = vmul.f32 %v490, %v492
        %v496 = vperm.slane %v460, 0
        %v498 = vadd.f32 %v494, %v496
        %v499 = vld [vmem:[%s3] sm:$0xff]
        %v500 = vld [vmem:[%s3 + $0x8] sm:$0xff]
        %v501 = vld [vmem:[%s3 + $0x10] sm:$0xff]
        %v502 = vld [vmem:[%s3 + $0x18] sm:$0xff]
        %v503 = vld [vmem:[%s4] sm:$0x1]
        %v505 = vperm.slane %v503, 0
        %v508 = vsel %vm461, %v498, 0
        %510 = vmatpush.msra.mxu0 0.0
        %511 = vmatpush.msra.mxu0 0.0
        %512 = vmatpush.msra.mxu0 0.0
        %513 = vmatpush.msra.mxu0 0.0
        %514 = vmatpush.msra.mxu0 0.0
        %515 = vmatpush.msra.mxu0 0.0
        %516 = vmatpush.msra.mxu0 0.0
        %517 = vmatpush.msra.mxu0 0.0
        %518 = vmatpush.msra.mxu0 0.0
        %519 = vmatpush.msra.mxu0 0.0
        %520 = vmatpush.msra.mxu0 0.0
        %521 = vmatpush.msra.mxu0 0.0
        %522 = vmatpush.msra.mxu0 %v502
        %523 = vmatpush.msra.mxu0 %v501
        %524 = vmatpush.msra.mxu0 %v500
        %525 = vmatpush.msra.mxu0 %v499
        %526 = vmatmul.f32.gmra.mxu0 %v508
        %v527 = vpop.f32.mrf.mxu0
        %v528 = vadd.f32 %v505, %v527
        %529 = vdwg.mxu0
        %531 = vrot.lane.b32.xlu0 %v528, 120
        %v532 = vpop.permute.xlu0 %531
        %534 = vrot.lane.b32.xlu0 %v528, 112
        %v535 = vpop.permute.xlu0 %534
        %537 = vrot.lane.b32.xlu0 %v528, 104
        %v538 = vpop.permute.xlu0 %537
        %540 = vrot.lane.b32.xlu0 %v528, 96
        %v541 = vpop.permute.xlu0 %540
        %543 = vrot.lane.b32.xlu0 %v528, 88
        %v544 = vpop.permute.xlu0 %543
        %546 = vrot.lane.b32.xlu0 %v528, 80
        %v547 = vpop.permute.xlu0 %546
        %549 = vrot.lane.b32.xlu0 %v528, 72
        %v550 = vpop.permute.xlu0 %549
        %552 = vrot.lane.b32.xlu0 %v528, 64
        %v553 = vpop.permute.xlu0 %552
        %555 = vrot.lane.b32.xlu0 %v528, 56
        %v556 = vpop.permute.xlu0 %555
        %558 = vrot.lane.b32.xlu0 %v528, 48
        %v559 = vpop.permute.xlu0 %558
        %561 = vrot.lane.b32.xlu0 %v528, 40
        %v562 = vpop.permute.xlu0 %561
        %v564 = vrot.slane %v535, 4
        %vm565 = vcmask 1047556
        %v566 = vsel %vm565, %v564, %v528
        %v567 = vrot.slane %v528, 4
        %v568 = vsel %vm565, %v535, %v567
        %v570 = vunpack.c.l.s4 1983009808
        %v571 = vunpack.c.0.s8 %v570
        %v572 = vperm.slane %v566, %v571
        %v574 = vunpack.c.l.s4 1983009808
        %v575 = vunpack.c.0.s8 %v574
        %v576 = vperm.slane %v568, %v575
        %v577 = vrot.slane %v538, 4
        %v578 = vsel %vm565, %v577, %v532
        %v579 = vrot.slane %v532, 4
        %v580 = vsel %vm565, %v538, %v579
        %v582 = vunpack.c.l.s4 1983009808
        %v583 = vunpack.c.0.s8 %v582
        %v584 = vperm.slane %v578, %v583
        %v586 = vunpack.c.l.s4 1983009808
        %v587 = vunpack.c.0.s8 %v586
        %v588 = vperm.slane %v580, %v587
        %v589 = vrot.slane %v547, 4
        %v590 = vsel %vm565, %v589, %v541
        %v591 = vrot.slane %v541, 4
        %v592 = vsel %vm565, %v547, %v591
        %v594 = vunpack.c.l.s4 1983009808
        %v595 = vunpack.c.0.s8 %v594
        %v596 = vperm.slane %v590, %v595
        %v598 = vunpack.c.l.s4 1983009808
        %v599 = vunpack.c.0.s8 %v598
        %v600 = vperm.slane %v592, %v599
        %v601 = vrot.slane %v550, 4
        %v602 = vsel %vm565, %v601, %v544
        %v603 = vrot.slane %v544, 4
        %v604 = vsel %vm565, %v550, %v603
        %v606 = vunpack.c.l.s4 1983009808
        %v607 = vunpack.c.0.s8 %v606
        %v608 = vperm.slane %v602, %v607
        %v610 = vunpack.c.l.s4 1983009808
        %v611 = vunpack.c.0.s8 %v610
        %v612 = vperm.slane %v604, %v611
        %v613 = vrot.slane %v584, 4
        %v614 = vsel %vm565, %v613, %v572
        %v615 = vrot.slane %v572, 4
        %v616 = vsel %vm565, %v584, %v615
        %v618 = vunpack.c.l.s4 1934713408
        %v619 = vunpack.c.0.s8 %v618
        %v620 = vperm.slane %v614, %v619
        %v622 = vunpack.c.l.s4 1934713408
        %v623 = vunpack.c.0.s8 %v622
        %v624 = vperm.slane %v616, %v623
        %v625 = vrot.slane %v588, 4
        %v626 = vsel %vm565, %v625, %v576
        %v627 = vrot.slane %v576, 4
        %v628 = vsel %vm565, %v588, %v627
        %v630 = vunpack.c.l.s4 1934713408
        %v631 = vunpack.c.0.s8 %v630
        %v632 = vperm.slane %v626, %v631
        %v634 = vunpack.c.l.s4 1934713408
        %v635 = vunpack.c.0.s8 %v634
        %v636 = vperm.slane %v628, %v635
        %v637 = vrot.slane %v608, 4
        %v638 = vsel %vm565, %v637, %v596
        %v639 = vrot.slane %v596, 4
        %v640 = vsel %vm565, %v608, %v639
        %v642 = vunpack.c.l.s4 1934713408
        %v643 = vunpack.c.0.s8 %v642
        %v644 = vperm.slane %v638, %v643
        %v646 = vunpack.c.l.s4 1934713408
        %v647 = vunpack.c.0.s8 %v646
        %v648 = vperm.slane %v640, %v647
        %v649 = vrot.slane %v612, 4
        %v650 = vsel %vm565, %v649, %v600
        %v651 = vrot.slane %v600, 4
        %v652 = vsel %vm565, %v612, %v651
        %v654 = vunpack.c.l.s4 1934713408
        %v655 = vunpack.c.0.s8 %v654
        %v656 = vperm.slane %v650, %v655
        %v658 = vunpack.c.l.s4 1934713408
        %v659 = vunpack.c.0.s8 %v658
        %v660 = vperm.slane %v652, %v659
        %v661 = vrot.slane %v644, 4
        %v662 = vsel %vm565, %v661, %v620
        %v663 = vrot.slane %v620, 4
        %v664 = vsel %vm565, %v644, %v663
        %v665 = vrot.slane %v648, 4
        %v666 = vsel %vm565, %v665, %v624
        %v667 = vrot.slane %v624, 4
        %v668 = vsel %vm565, %v648, %v667
        %v669 = vrot.slane %v656, 4
        %v670 = vsel %vm565, %v669, %v632
        %v671 = vrot.slane %v632, 4
        %v672 = vsel %vm565, %v656, %v671
        %v673 = vrot.slane %v660, 4
        %v674 = vsel %vm565, %v673, %v636
        %v675 = vrot.slane %v636, 4
        %v676 = vsel %vm565, %v660, %v675
        %v677 = vrot.slane %v559, 4
        %v678 = vsel %vm565, %v677, %v553
        %v679 = vrot.slane %v553, 4
        %v680 = vsel %vm565, %v559, %v679
        %v682 = vunpack.c.l.s4 1983009808
        %v683 = vunpack.c.0.s8 %v682
        %v684 = vperm.slane %v678, %v683
        %v686 = vunpack.c.l.s4 1983009808
        %v687 = vunpack.c.0.s8 %v686
        %v688 = vperm.slane %v680, %v687
        %v689 = vrot.slane %v562, 4
        %v690 = vsel %vm565, %v689, %v556
        %v691 = vrot.slane %v556, 4
        %v692 = vsel %vm565, %v562, %v691
        %v694 = vunpack.c.l.s4 1983009808
        %v695 = vunpack.c.0.s8 %v694
        %v696 = vperm.slane %v690, %v695
        %v698 = vunpack.c.l.s4 1983009808
        %v699 = vunpack.c.0.s8 %v698
        %v700 = vperm.slane %v692, %v699
        %v701 = vrot.slane %v696, 4
        %v702 = vsel %vm565, %v701, %v684
        %v703 = vrot.slane %v684, 4
        %v704 = vsel %vm565, %v696, %v703
        %v706 = vunpack.c.l.s4 1934713408
        %v707 = vunpack.c.0.s8 %v706
        %v708 = vperm.slane %v702, %v707
        %v710 = vunpack.c.l.s4 1934713408
        %v711 = vunpack.c.0.s8 %v710
        %v712 = vperm.slane %v704, %v711
        %v713 = vrot.slane %v700, 4
        %v714 = vsel %vm565, %v713, %v688
        %v715 = vrot.slane %v688, 4
        %v716 = vsel %vm565, %v700, %v715
        %v718 = vunpack.c.l.s4 1934713408
        %v719 = vunpack.c.0.s8 %v718
        %v720 = vperm.slane %v714, %v719
        %v722 = vunpack.c.l.s4 1934713408
        %v723 = vunpack.c.0.s8 %v722
        %v724 = vperm.slane %v716, %v723
        %v725 = vrot.slane %v708, 4
        %v726 = vsel %vm565, 0.0, %v725
        %v727 = vrot.slane %v712, 4
        %v728 = vsel %vm565, 0.0, %v727
        %v729 = vrot.slane %v720, 4
        %v730 = vsel %vm565, 0.0, %v729
        %v731 = vrot.slane %v724, 4
        %v732 = vsel %vm565, 0.0, %v731
        %v733 = vrot.slane %v666, 4
        %v734 = vsel %vm565, %v733, %v662
        %v735 = vrot.slane %v662, 4
        %v736 = vsel %vm565, %v666, %v735
        %v738 = vunpack.c.l.s4 1983009808
        %v739 = vunpack.c.0.s8 %v738
        %v740 = vperm.slane %v734, %v739
        %v742 = vunpack.c.l.s4 1983009808
        %v743 = vunpack.c.0.s8 %v742
        %v744 = vperm.slane %v736, %v743
        %v745 = vrot.slane %v668, 4
        %v746 = vsel %vm565, %v745, %v664
        %v747 = vrot.slane %v664, 4
        %v748 = vsel %vm565, %v668, %v747
        %v750 = vunpack.c.l.s4 1983009808
        %v751 = vunpack.c.0.s8 %v750
        %v752 = vperm.slane %v746, %v751
        %v754 = vunpack.c.l.s4 1983009808
        %v755 = vunpack.c.0.s8 %v754
        %v756 = vperm.slane %v748, %v755
        %v757 = vrot.slane %v674, 4
        %v758 = vsel %vm565, %v757, %v670
        %v759 = vrot.slane %v670, 4
        %v760 = vsel %vm565, %v674, %v759
        %v762 = vunpack.c.l.s4 1983009808
        %v763 = vunpack.c.0.s8 %v762
        %v764 = vperm.slane %v758, %v763
        %v766 = vunpack.c.l.s4 1983009808
        %v767 = vunpack.c.0.s8 %v766
        %v768 = vperm.slane %v760, %v767
        %v769 = vrot.slane %v676, 4
        %v770 = vsel %vm565, %v769, %v672
        %v771 = vrot.slane %v672, 4
        %v772 = vsel %vm565, %v676, %v771
        %v774 = vunpack.c.l.s4 1983009808
        %v775 = vunpack.c.0.s8 %v774
        %v776 = vperm.slane %v770, %v775
        %v778 = vunpack.c.l.s4 1983009808
        %v779 = vunpack.c.0.s8 %v778
        %v780 = vperm.slane %v772, %v779
        %v781 = vrot.slane %v752, 4
        %v782 = vsel %vm565, %v781, %v740
        %v783 = vrot.slane %v740, 4
        %v784 = vsel %vm565, %v752, %v783
        %v786 = vunpack.c.l.s4 1934713408
        %v787 = vunpack.c.0.s8 %v786
        %v788 = vperm.slane %v782, %v787
        %v790 = vunpack.c.l.s4 1934713408
        %v791 = vunpack.c.0.s8 %v790
        %v792 = vperm.slane %v784, %v791
        %v793 = vrot.slane %v756, 4
        %v794 = vsel %vm565, %v793, %v744
        %v795 = vrot.slane %v744, 4
        %v796 = vsel %vm565, %v756, %v795
        %v798 = vunpack.c.l.s4 1934713408
        %v799 = vunpack.c.0.s8 %v798
        %v800 = vperm.slane %v794, %v799
        %v802 = vunpack.c.l.s4 1934713408
        %v803 = vunpack.c.0.s8 %v802
        %v804 = vperm.slane %v796, %v803
        %v805 = vrot.slane %v776, 4
        %v806 = vsel %vm565, %v805, %v764
        %v807 = vrot.slane %v764, 4
        %v808 = vsel %vm565, %v776, %v807
        %v810 = vunpack.c.l.s4 1934713408
        %v811 = vunpack.c.0.s8 %v810
        %v812 = vperm.slane %v806, %v811
        %v814 = vunpack.c.l.s4 1934713408
        %v815 = vunpack.c.0.s8 %v814
        %v816 = vperm.slane %v808, %v815
        %v817 = vrot.slane %v780, 4
        %v818 = vsel %vm565, %v817, %v768
        %v819 = vrot.slane %v768, 4
        %v820 = vsel %vm565, %v780, %v819
        %v822 = vunpack.c.l.s4 1934713408
        %v823 = vunpack.c.0.s8 %v822
        %v824 = vperm.slane %v818, %v823
        %v826 = vunpack.c.l.s4 1934713408
        %v827 = vunpack.c.0.s8 %v826
        %v828 = vperm.slane %v820, %v827
        %v829 = vrot.slane %v812, 4
        %v830 = vsel %vm565, %v829, %v788
        %v831 = vrot.slane %v788, 4
        %v832 = vsel %vm565, %v812, %v831
        %v833 = vrot.slane %v816, 4
        %v834 = vsel %vm565, %v833, %v792
        %v835 = vrot.slane %v792, 4
        %v836 = vsel %vm565, %v816, %v835
        %v837 = vrot.slane %v824, 4
        %v838 = vsel %vm565, %v837, %v800
        %v839 = vrot.slane %v800, 4
        %v840 = vsel %vm565, %v824, %v839
        %v841 = vrot.slane %v828, 4
        %v842 = vsel %vm565, %v841, %v804
        %v843 = vrot.slane %v804, 4
        %v844 = vsel %vm565, %v828, %v843
        %v845 = vsel %vm565, %v727, %v708
        %v847 = vunpack.c.l.s4 1983009808
        %v848 = vunpack.c.0.s8 %v847
        %v849 = vperm.slane %v845, %v848
        %v850 = vrot.slane %v728, 4
        %v851 = vsel %vm565, %v850, %v726
        %v853 = vunpack.c.l.s4 1983009808
        %v854 = vunpack.c.0.s8 %v853
        %v855 = vperm.slane %v851, %v854
        %v856 = vsel %vm565, %v731, %v720
        %v858 = vunpack.c.l.s4 1983009808
        %v859 = vunpack.c.0.s8 %v858
        %v860 = vperm.slane %v856, %v859
        %v861 = vrot.slane %v732, 4
        %v862 = vsel %vm565, %v861, %v730
        %v864 = vunpack.c.l.s4 1983009808
        %v865 = vunpack.c.0.s8 %v864
        %v866 = vperm.slane %v862, %v865
        %v867 = vrot.slane %v855, 4
        %v868 = vsel %vm565, %v867, %v849
        %v869 = vrot.slane %v849, 4
        %v870 = vsel %vm565, %v855, %v869
        %v872 = vunpack.c.l.s4 1934713408
        %v873 = vunpack.c.0.s8 %v872
        %v874 = vperm.slane %v868, %v873
        %v876 = vunpack.c.l.s4 1934713408
        %v877 = vunpack.c.0.s8 %v876
        %v878 = vperm.slane %v870, %v877
        %v879 = vrot.slane %v866, 4
        %v880 = vsel %vm565, %v879, %v860
        %v881 = vrot.slane %v860, 4
        %v882 = vsel %vm565, %v866, %v881
        %v884 = vunpack.c.l.s4 1934713408
        %v885 = vunpack.c.0.s8 %v884
        %v886 = vperm.slane %v880, %v885
        %v888 = vunpack.c.l.s4 1934713408
        %v889 = vunpack.c.0.s8 %v888
        %v890 = vperm.slane %v882, %v889
        %v891 = vrot.slane %v886, 4
        %v892 = vsel %vm565, %v891, %v874
        %v893 = vrot.slane %v874, 4
        %v894 = vsel %vm565, %v886, %v893
        %v895 = vrot.slane %v890, 4
        %v896 = vsel %vm565, %v895, %v878
        %v897 = vrot.slane %v878, 4
        %v898 = vsel %vm565, %v890, %v897
        %vm899 = vcmask 64512
        %v901 = vsel %vm899, %v830, 0
        %v904 = vsel %vm899, %v838, 0
        %906 = vmatpush.xpose.msra.mxu0 0.0
        %907 = vmatpush.xpose.msra.mxu0 0.0
        %908 = vmatpush.xpose.msra.mxu0 0.0
        %909 = vmatpush.xpose.msra.mxu0 0.0
        %910 = vmatpush.xpose.msra.mxu0 0.0
        %911 = vmatpush.xpose.msra.mxu0 0.0
        %912 = vmatpush.xpose.msra.mxu0 0.0
        %913 = vmatpush.xpose.msra.mxu0 0.0
        %914 = vmatpush.xpose.msra.mxu0 0.0
        %915 = vmatpush.xpose.msra.mxu0 0.0
        %916 = vmatpush.xpose.msra.mxu0 0.0
        %917 = vmatpush.xpose.msra.mxu0 0.0
        %918 = vmatpush.xpose.msra.mxu0 0.0
        %919 = vmatpush.xpose.msra.mxu0 0.0
        %920 = vmatpush.xpose.msra.mxu0 0.0
        %921 = vmatpush.xpose.msra.mxu0 %v904
        %922 = vmatmul.f32.gmra.mxu0 %v901
        %v923 = vpop.f32.mrf.mxu0
        %v924 = vadd.f32 0.0, %v923
        %925 = vdwg.mxu0
        %v927 = vsel %vm899, %v832, 0
        %v930 = vsel %vm899, %v840, 0
        %932 = vmatpush.xpose.msra.mxu0 0.0
        %933 = vmatpush.xpose.msra.mxu0 0.0
        %934 = vmatpush.xpose.msra.mxu0 0.0
        %935 = vmatpush.xpose.msra.mxu0 0.0
        %936 = vmatpush.xpose.msra.mxu0 0.0
        %937 = vmatpush.xpose.msra.mxu0 0.0
        %938 = vmatpush.xpose.msra.mxu0 0.0
        %939 = vmatpush.xpose.msra.mxu0 0.0
        %940 = vmatpush.xpose.msra.mxu0 0.0
        %941 = vmatpush.xpose.msra.mxu0 0.0
        %942 = vmatpush.xpose.msra.mxu0 0.0
        %943 = vmatpush.xpose.msra.mxu0 0.0
        %944 = vmatpush.xpose.msra.mxu0 0.0
        %945 = vmatpush.xpose.msra.mxu0 0.0
        %946 = vmatpush.xpose.msra.mxu0 0.0
        %947 = vmatpush.xpose.msra.mxu0 %v930
        %948 = vmatmul.f32.gmra.mxu0 %v927
        %v949 = vpop.f32.mrf.mxu0
        %v950 = vadd.f32 0.0, %v949
        %951 = vdwg.mxu0
        %v953 = vsel %vm899, %v834, 0
        %v956 = vsel %vm899, %v842, 0
        %958 = vmatpush.xpose.msra.mxu0 0.0
        %959 = vmatpush.xpose.msra.mxu0 0.0
        %960 = vmatpush.xpose.msra.mxu0 0.0
        %961 = vmatpush.xpose.msra.mxu0 0.0
        %962 = vmatpush.xpose.msra.mxu0 0.0
        %963 = vmatpush.xpose.msra.mxu0 0.0
        %964 = vmatpush.xpose.msra.mxu0 0.0
        %965 = vmatpush.xpose.msra.mxu0 0.0
        %966 = vmatpush.xpose.msra.mxu0 0.0
        %967 = vmatpush.xpose.msra.mxu0 0.0
        %968 = vmatpush.xpose.msra.mxu0 0.0
        %969 = vmatpush.xpose.msra.mxu0 0.0
        %970 = vmatpush.xpose.msra.mxu0 0.0
        %971 = vmatpush.xpose.msra.mxu0 0.0
        %972 = vmatpush.xpose.msra.mxu0 0.0
        %973 = vmatpush.xpose.msra.mxu0 %v956
        %974 = vmatmul.f32.gmra.mxu0 %v953
        %v975 = vpop.f32.mrf.mxu0
        %v976 = vadd.f32 0.0, %v975
        %977 = vdwg.mxu0
        %v979 = vsel %vm899, %v836, 0
        %v982 = vsel %vm899, %v844, 0
        %984 = vmatpush.xpose.msra.mxu0 0.0
        %985 = vmatpush.xpose.msra.mxu0 0.0
        %986 = vmatpush.xpose.msra.mxu0 0.0
        %987 = vmatpush.xpose.msra.mxu0 0.0
        %988 = vmatpush.xpose.msra.mxu0 0.0
        %989 = vmatpush.xpose.msra.mxu0 0.0
        %990 = vmatpush.xpose.msra.mxu0 0.0
        %991 = vmatpush.xpose.msra.mxu0 0.0
        %992 = vmatpush.xpose.msra.mxu0 0.0
        %993 = vmatpush.xpose.msra.mxu0 0.0
        %994 = vmatpush.xpose.msra.mxu0 0.0
        %995 = vmatpush.xpose.msra.mxu0 0.0
        %996 = vmatpush.xpose.msra.mxu0 0.0
        %997 = vmatpush.xpose.msra.mxu0 0.0
        %998 = vmatpush.xpose.msra.mxu0 0.0
        %999 = vmatpush.xpose.msra.mxu0 %v982
        %1000 = vmatmul.f32.gmra.mxu0 %v979
        %v1001 = vpop.f32.mrf.mxu0
        %v1002 = vadd.f32 0.0, %v1001
        %1003 = vdwg.mxu0
        %v1004 = vsel %vm899, %v924, -inf
        %1005 = vmax.xlane.f32.xlu0 %v1004
        %v1006 = vpop.xlane.xlu0 %1005
        %v1007 = vsel %vm899, %v950, -inf
        %1008 = vmax.xlane.f32.xlu0 %v1007
        %v1009 = vpop.xlane.xlu0 %1008
        %v1010 = vsel %vm899, %v976, -inf
        %1011 = vmax.xlane.f32.xlu0 %v1010
        %v1012 = vpop.xlane.xlu0 %1011
        %v1013 = vsel %vm899, %v1002, -inf
        %1014 = vmax.xlane.f32.xlu0 %v1013
        %v1015 = vpop.xlane.xlu0 %1014
        %v1016 = vsub.f32 %v924, %v1006
        %v1017 = vsub.f32 %v950, %v1009
        %v1018 = vsub.f32 %v976, %v1012
        %v1019 = vsub.f32 %v1002, %v1015
        %v1020 = vmul.f32 %v1016, 1.442695
        %v1021 = vpow.pop %v1020
        %v1022 = vmul.f32 %v1017, 1.442695
        %v1023 = vpow.pop %v1022
        %v1024 = vmul.f32 %v1018, 1.442695
        %v1025 = vpow.pop %v1024
        %v1026 = vmul.f32 %v1019, 1.442695
        %v1027 = vpow.pop %v1026
        %v1028 = vsel %vm899, %v1021, 0.0
        %1029 = vadd.xlane.f32.xlu0 %v1028
        %v1030 = vpop.xlane.xlu0 %1029
        %v1031 = vsel %vm899, %v1023, 0.0
        %1032 = vadd.xlane.f32.xlu0 %v1031
        %v1033 = vpop.xlane.xlu0 %1032
        %v1034 = vsel %vm899, %v1025, 0.0
        %1035 = vadd.xlane.f32.xlu0 %v1034
        %v1036 = vpop.xlane.xlu0 %1035
        %v1037 = vsel %vm899, %v1027, 0.0
        %1038 = vadd.xlane.f32.xlu0 %v1037
        %v1039 = vpop.xlane.xlu0 %1038
        %v1041 = vsel %vm899, %v1021, 0
        %1043 = vmatpush.msra.mxu0 0.0
        %1044 = vmatpush.msra.mxu0 0.0
        %1045 = vmatpush.msra.mxu0 0.0
        %1046 = vmatpush.msra.mxu0 0.0
        %1047 = vmatpush.msra.mxu0 0.0
        %1048 = vmatpush.msra.mxu0 0.0
        %1049 = vmatpush.msra.mxu0 0.0
        %1050 = vmatpush.msra.mxu0 0.0
        %1051 = vmatpush.msra.mxu0 0.0
        %1052 = vmatpush.msra.mxu0 0.0
        %1053 = vmatpush.msra.mxu0 0.0
        %1054 = vmatpush.msra.mxu0 0.0
        %1055 = vmatpush.msra.mxu0 0.0
        %1056 = vmatpush.msra.mxu0 0.0
        %1057 = vmatpush.msra.mxu0 0.0
        %1058 = vmatpush.msra.mxu0 %v892
        %1059 = vmatmul.f32.gmra.mxu0 %v1041
        %v1060 = vpop.f32.mrf.mxu0
        %v1061 = vadd.f32 0.0, %v1060
        %1062 = vdwg.mxu0
        %v1064 = vsel %vm899, %v1023, 0
        %1066 = vmatpush.msra.mxu0 0.0
        %1067 = vmatpush.msra.mxu0 0.0
        %1068 = vmatpush.msra.mxu0 0.0
        %1069 = vmatpush.msra.mxu0 0.0
        %1070 = vmatpush.msra.mxu0 0.0
        %1071 = vmatpush.msra.mxu0 0.0
        %1072 = vmatpush.msra.mxu0 0.0
        %1073 = vmatpush.msra.mxu0 0.0
        %1074 = vmatpush.msra.mxu0 0.0
        %1075 = vmatpush.msra.mxu0 0.0
        %1076 = vmatpush.msra.mxu0 0.0
        %1077 = vmatpush.msra.mxu0 0.0
        %1078 = vmatpush.msra.mxu0 0.0
        %1079 = vmatpush.msra.mxu0 0.0
        %1080 = vmatpush.msra.mxu0 0.0
        %1081 = vmatpush.msra.mxu0 %v894
        %1082 = vmatmul.f32.gmra.mxu0 %v1064
        %v1083 = vpop.f32.mrf.mxu0
        %v1084 = vadd.f32 0.0, %v1083
        %1085 = vdwg.mxu0
        %v1087 = vsel %vm899, %v1025, 0
        %1089 = vmatpush.msra.mxu0 0.0
        %1090 = vmatpush.msra.mxu0 0.0
        %1091 = vmatpush.msra.mxu0 0.0
        %1092 = vmatpush.msra.mxu0 0.0
        %1093 = vmatpush.msra.mxu0 0.0
        %1094 = vmatpush.msra.mxu0 0.0
        %1095 = vmatpush.msra.mxu0 0.0
        %1096 = vmatpush.msra.mxu0 0.0
        %1097 = vmatpush.msra.mxu0 0.0
        %1098 = vmatpush.msra.mxu0 0.0
        %1099 = vmatpush.msra.mxu0 0.0
        %1100 = vmatpush.msra.mxu0 0.0
        %1101 = vmatpush.msra.mxu0 0.0
        %1102 = vmatpush.msra.mxu0 0.0
        %1103 = vmatpush.msra.mxu0 0.0
        %1104 = vmatpush.msra.mxu0 %v896
        %1105 = vmatmul.f32.gmra.mxu0 %v1087
        %v1106 = vpop.f32.mrf.mxu0
        %v1107 = vadd.f32 0.0, %v1106
        %1108 = vdwg.mxu0
        %v1110 = vsel %vm899, %v1027, 0
        %1112 = vmatpush.msra.mxu0 0.0
        %1113 = vmatpush.msra.mxu0 0.0
        %1114 = vmatpush.msra.mxu0 0.0
        %1115 = vmatpush.msra.mxu0 0.0
        %1116 = vmatpush.msra.mxu0 0.0
        %1117 = vmatpush.msra.mxu0 0.0
        %1118 = vmatpush.msra.mxu0 0.0
        %1119 = vmatpush.msra.mxu0 0.0
        %1120 = vmatpush.msra.mxu0 0.0
        %1121 = vmatpush.msra.mxu0 0.0
        %1122 = vmatpush.msra.mxu0 0.0
        %1123 = vmatpush.msra.mxu0 0.0
        %1124 = vmatpush.msra.mxu0 0.0
        %1125 = vmatpush.msra.mxu0 0.0
        %1126 = vmatpush.msra.mxu0 0.0
        %1127 = vmatpush.msra.mxu0 %v898
        %1128 = vmatmul.f32.gmra.mxu0 %v1110
        %v1129 = vpop.f32.mrf.mxu0
        %v1130 = vadd.f32 0.0, %v1129
        %1131 = vdwg.mxu0
        %v1132 = vrcp.pop %v1030
        %v1133 = vrcp.pop %v1033
        %v1134 = vrcp.pop %v1036
        %v1135 = vrcp.pop %v1039
        %v1136 = vmul.f32 %v1061, %v1132
        %v1137 = vmul.f32 %v1084, %v1133
        %v1138 = vmul.f32 %v1107, %v1134
        %v1139 = vmul.f32 %v1130, %v1135
        %v1140 = vrot.slane %v1138, 4
        %v1141 = vsel %vm565, %v1140, %v1136
        %v1142 = vrot.slane %v1136, 4
        %v1143 = vsel %vm565, %v1138, %v1142
        %v1145 = vunpack.c.l.s4 1983009808
        %v1146 = vunpack.c.0.s8 %v1145
        %v1147 = vperm.slane %v1141, %v1146
        %v1149 = vunpack.c.l.s4 1983009808
        %v1150 = vunpack.c.0.s8 %v1149
        %v1151 = vperm.slane %v1143, %v1150
        %v1152 = vrot.slane %v1139, 4
        %v1153 = vsel %vm565, %v1152, %v1137
        %v1154 = vrot.slane %v1137, 4
        %v1155 = vsel %vm565, %v1139, %v1154
        %v1157 = vunpack.c.l.s4 1983009808
        %v1158 = vunpack.c.0.s8 %v1157
        %v1159 = vperm.slane %v1153, %v1158
        %v1161 = vunpack.c.l.s4 1983009808
        %v1162 = vunpack.c.0.s8 %v1161
        %v1163 = vperm.slane %v1155, %v1162
        %v1164 = vrot.slane %v1159, 4
        %v1165 = vsel %vm565, %v1164, %v1147
        %v1166 = vrot.slane %v1147, 4
        %v1167 = vsel %vm565, %v1159, %v1166
        %v1169 = vunpack.c.l.s4 1934713408
        %v1170 = vunpack.c.0.s8 %v1169
        %v1171 = vperm.slane %v1165, %v1170
        %v1173 = vunpack.c.l.s4 1934713408
        %v1174 = vunpack.c.0.s8 %v1173
        %v1175 = vperm.slane %v1167, %v1174
        %v1176 = vrot.slane %v1163, 4
        %v1177 = vsel %vm565, %v1176, %v1151
        %v1178 = vrot.slane %v1151, 4
        %v1179 = vsel %vm565, %v1163, %v1178
        %v1181 = vunpack.c.l.s4 1934713408
        %v1182 = vunpack.c.0.s8 %v1181
        %v1183 = vperm.slane %v1177, %v1182
        %v1185 = vunpack.c.l.s4 1934713408
        %v1186 = vunpack.c.0.s8 %v1185
        %v1187 = vperm.slane %v1179, %v1186
        %v1188 = vrot.slane %v1171, 4
        %v1189 = vsel %vm565, 0.0, %v1188
        %v1190 = vrot.slane %v1175, 4
        %v1191 = vsel %vm565, 0.0, %v1190
        %v1192 = vrot.slane %v1183, 4
        %v1193 = vsel %vm565, 0.0, %v1192
        %v1194 = vrot.slane %v1187, 4
        %v1195 = vsel %vm565, 0.0, %v1194
        %v1196 = vsel %vm565, %v1190, %v1171
        %v1198 = vunpack.c.l.s4 1983009808
        %v1199 = vunpack.c.0.s8 %v1198
        %v1200 = vperm.slane %v1196, %v1199
        %v1201 = vrot.slane %v1191, 4
        %v1202 = vsel %vm565, %v1201, %v1189
        %v1204 = vunpack.c.l.s4 1983009808
        %v1205 = vunpack.c.0.s8 %v1204
        %v1206 = vperm.slane %v1202, %v1205
        %v1207 = vsel %vm565, %v1194, %v1183
        %v1209 = vunpack.c.l.s4 1983009808
        %v1210 = vunpack.c.0.s8 %v1209
        %v1211 = vperm.slane %v1207, %v1210
        %v1212 = vrot.slane %v1195, 4
        %v1213 = vsel %vm565, %v1212, %v1193
        %v1215 = vunpack.c.l.s4 1983009808
        %v1216 = vunpack.c.0.s8 %v1215
        %v1217 = vperm.slane %v1213, %v1216
        %v1218 = vrot.slane %v1206, 4
        %v1219 = vsel %vm565, %v1218, %v1200
        %v1220 = vrot.slane %v1200, 4
        %v1221 = vsel %vm565, %v1206, %v1220
        %v1223 = vunpack.c.l.s4 1934713408
        %v1224 = vunpack.c.0.s8 %v1223
        %v1225 = vperm.slane %v1219, %v1224
        %v1227 = vunpack.c.l.s4 1934713408
        %v1228 = vunpack.c.0.s8 %v1227
        %v1229 = vperm.slane %v1221, %v1228
        %v1230 = vrot.slane %v1217, 4
        %v1231 = vsel %vm565, %v1230, %v1211
        %v1232 = vrot.slane %v1211, 4
        %v1233 = vsel %vm565, %v1217, %v1232
        %v1235 = vunpack.c.l.s4 1934713408
        %v1236 = vunpack.c.0.s8 %v1235
        %v1237 = vperm.slane %v1231, %v1236
        %v1239 = vunpack.c.l.s4 1934713408
        %v1240 = vunpack.c.0.s8 %v1239
        %v1241 = vperm.slane %v1233, %v1240
        %v1242 = vrot.slane %v1237, 4
        %v1243 = vsel %vm565, %v1242, %v1225
        %v1244 = vrot.slane %v1225, 4
        %v1245 = vsel %vm565, %v1237, %v1244
        %v1246 = vrot.slane %v1241, 4
        %v1247 = vsel %vm565, %v1246, %v1229
        %v1248 = vrot.slane %v1229, 4
        %v1249 = vsel %vm565, %v1241, %v1248
        %1251 = vrot.lane.b32.xlu0 %v1245, 8
        %v1252 = vpop.permute.xlu0 %1251
        %1255 = vrot.lane.b32.xlu0 %v1247, 16
        %v1256 = vpop.permute.xlu0 %1255
        %1259 = vrot.lane.b32.xlu0 %v1249, 24
        %v1260 = vpop.permute.xlu0 %1259
        %v1262 = vsel %vm899, %v1243, %v1252
        %vm1263 = vcmask 130048
        %v1264 = vsel %vm1263, %v1262, %v1256
        %vm1265 = vcmask 195584
        %v1266 = vsel %vm1265, %v1264, %v1260
        %v1267 = vld [vmem:[%s5] sm:$0xff]
        %v1268 = vld [vmem:[%s5 + $0x8] sm:$0xff]
        %v1269 = vld [vmem:[%s5 + $0x10] sm:$0xff]
        %v1270 = vld [vmem:[%s5 + $0x18] sm:$0xff]
        %v1271 = vld [vmem:[%s6] sm:$0x1]
        %v1273 = vperm.slane %v1271, 0
        %v1276 = vsel %vm461, %v1266, 0
        %1278 = vmatpush.msra.mxu0 0.0
        %1279 = vmatpush.msra.mxu0 0.0
        %1280 = vmatpush.msra.mxu0 0.0
        %1281 = vmatpush.msra.mxu0 0.0
        %1282 = vmatpush.msra.mxu0 0.0
        %1283 = vmatpush.msra.mxu0 0.0
        %1284 = vmatpush.msra.mxu0 0.0
        %1285 = vmatpush.msra.mxu0 0.0
        %1286 = vmatpush.msra.mxu0 0.0
        %1287 = vmatpush.msra.mxu0 0.0
        %1288 = vmatpush.msra.mxu0 0.0
        %1289 = vmatpush.msra.mxu0 0.0
        %1290 = vmatpush.msra.mxu0 %v1270
        %1291 = vmatpush.msra.mxu0 %v1269
        %1292 = vmatpush.msra.mxu0 %v1268
        %1293 = vmatpush.msra.mxu0 %v1267
        %1294 = vmatmul.f32.gmra.mxu0 %v1276
        %v1295 = vpop.f32.mrf.mxu0
        %v1296 = vadd.f32 %v1273, %v1295
        %1297 = vdwg.mxu0
        %v1298 = vadd.f32 %v458, %v1296
        %v1299 = vld [vmem:[%s7] sm:$0x1]
        %v1300 = vld [vmem:[%s8] sm:$0x1]
        %v1301 = vsel %vm461, %v1298, 0.0
        %1302 = vadd.xlane.f32.xlu0 %v1301
        %v1303 = vpop.xlane.xlu0 %1302
        %v1304 = vmul.f32 %v1303, %v471
        %v1305 = vsub.f32 %v1298, %v1304
        %v1306 = vmul.f32 %v1305, %v1305
        %v1307 = vsel %vm461, %v1306, 0.0
        %1308 = vadd.xlane.f32.xlu0 %v1307
        %v1309 = vpop.xlane.xlu0 %1308
        %v1310 = vmul.f32 %v1309, %v471
        %v1311 = vadd.f32 %v1310, 1e-05
        %v1312 = vrsqrt.pop %v1311
        %v1313 = vmul.f32 %v1312, %v1311
        %v1314 = vmul.f32 %v1313, %v1312
        %v1315 = vmul.f32 0.5, %v1314
        %v1316 = vsub.f32 1.5, %v1315
        %v1317 = vmul.f32 %v1312, %v1316
        %vm1318 = vweird.f32 %v1311
        %vm1319 = vweird.f32 %v1312
        %vm1320 = vmor %vm1318, %vm1319
        %v1321 = vsel %vm1320, %v1312, %v1317
        %v1322 = vmul.f32 %v1305, %v1321
        %v1324 = vperm.slane %v1299, 0
        %v1326 = vmul.f32 %v1322, %v1324
        %v1328 = vperm.slane %v1300, 0
        %v1330 = vadd.f32 %v1326, %v1328
        %v1331 = vld [vmem:[%s9] sm:$0xff]
        %v1332 = vld [vmem:[%s9 + $0x8] sm:$0xff]
        %v1333 = vld [vmem:[%s9 + $0x10] sm:$0xff]
        %v1334 = vld [vmem:[%s9 + $0x18] sm:$0xff]
        %v1335 = vld [vmem:[%s10] sm:$0x1]
        %v1337 = vperm.slane %v1335, 0
        %v1340 = vsel %vm461, %v1330, 0
        %1342 = vmatpush.msra.mxu0 0.0
        %1343 = vmatpush.msra.mxu0 0.0
        %1344 = vmatpush.msra.mxu0 0.0
        %1345 = vmatpush.msra.mxu0 0.0
        %1346 = vmatpush.msra.mxu0 0.0
        %1347 = vmatpush.msra.mxu0 0.0
        %1348 = vmatpush.msra.mxu0 0.0
        %1349 = vmatpush.msra.mxu0 0.0
        %1350 = vmatpush.msra.mxu0 0.0
        %1351 = vmatpush.msra.mxu0 0.0
        %1352 = vmatpush.msra.mxu0 0.0
        %1353 = vmatpush.msra.mxu0 0.0
        %1354 = vmatpush.msra.mxu0 %v1334
        %1355 = vmatpush.msra.mxu0 %v1333
        %1356 = vmatpush.msra.mxu0 %v1332
        %1357 = vmatpush.msra.mxu0 %v1331
        %1358 = vmatmul.f32.gmra.mxu0 %v1340
        %v1359 = vpop.f32.mrf.mxu0
        %v1360 = vadd.f32 %v1337, %v1359
        %1361 = vdwg.mxu0
        %v1362 = vmax.f32 %v1360, 0.0
        %v1363 = vld [vmem:[%s11] sm:$0xff]
        %v1364 = vld [vmem:[%s11 + $0x8] sm:$0xff]
        %v1365 = vld [vmem:[%s11 + $0x10] sm:$0xff]
        %v1366 = vld [vmem:[%s11 + $0x18] sm:$0xff]
        %v1367 = vld [vmem:[%s11 + $0x20] sm:$0xff]
        %v1368 = vld [vmem:[%s11 + $0x28] sm:$0xff]
        %v1369 = vld [vmem:[%s11 + $0x30] sm:$0xff]
        %v1370 = vld [vmem:[%s11 + $0x38] sm:$0xff]
        %v1371 = vld [vmem:[%s12] sm:$0x1]
        %v1373 = vperm.slane %v1371, 0
        %vm1375 = vcmask 523264
        %v1377 = vsel %vm1375, %v1362, 0
        %1379 = vmatpush.msra.mxu0 0.0
        %1380 = vmatpush.msra.mxu0 0.0
        %1381 = vmatpush.msra.mxu0 0.0
        %1382 = vmatpush.msra.mxu0 0.0
        %1383 = vmatpush.msra.mxu0 0.0
        %1384 = vmatpush.msra.mxu0 0.0
        %1385 = vmatpush.msra.mxu0 0.0
        %1386 = vmatpush.msra.mxu0 0.0
        %1387 = vmatpush.msra.mxu0 %v1370
        %1388 = vmatpush.msra.mxu0 %v1369
        %1389 = vmatpush.msra.mxu0 %v1368
        %1390 = vmatpush.msra.mxu0 %v1367
        %1391 = vmatpush.msra.mxu0 %v1366
        %1392 = vmatpush.msra.mxu0 %v1365
        %1393 = vmatpush.msra.mxu0 %v1364
        %1394 = vmatpush.msra.mxu0 %v1363
        %1395 = vmatmul.f32.gmra.mxu0 %v1377
        %v1396 = vpop.f32.mrf.mxu0
        %v1397 = vadd.f32 %v1373, %v1396
        %1398 = vdwg.mxu0
        %v1399 = vadd.f32 %v1298, %v1397
        %1400 = vst.msk [vmem:[%s457] sm:$0xff] %vm461, %v1399
        %s1401 = sand.u32 %s316, 1
        %s1402 = scalar_lea.sflag [#allocation4], %s1401
        %s1403 = sand.u32 %s316, 1
        %s1404 = smul.addr %s1403, 8
        %s1405 = scalar_lea.vmem [#allocation5], %s1404
        // Predicated region
        $region77: #{tpu_custom_call.1} parent=71 // pred_check
          %p1406 = pneg %p326
        $region78: #{tpu_custom_call.1} parent=71 // pred_check_branch
          %1408 = sbr.rel (%p1406) target = $region80
        $region79: #{tpu_custom_call.1} parent=71 // pred_region
          %1410 = vsyncadd %s1402, 0
          %s1411 = smul.addr %s30, 8
          %s1412 = scalar_lea.hbm %s13, %s1411
          %s1414 = sshll.u32 %s1405, 4
          %s1415 = int_to_ptr.vmem [resolvable:$true] %s1414
          %s1416 = sshll.u32 %s1412, 4
          %s1417 = int_to_ptr.hbm [resolvable:$true] %s1416
          %1419 = dma.vmem_to_hbm [thread:$0]  %s1415, 128, %s1417, %s1402
        $region80: #{tpu_custom_call.1} parent=71 // pred_fallthru
          _
      $region72: #{tpu_custom_call.1} parent=5 // pred_fallthru
        _
      %p1420 = scmp.le.s32.totalorder 2, %s25
      // Predicated region
      $region81: #{tpu_custom_call.1} parent=5 // pred_check
        %p1421 = pneg %p1420
      $region82: #{tpu_custom_call.1} parent=5 // pred_check_branch
        %1423 = sbr.rel (%p1421) target = $region84
      $region83: #{tpu_custom_call.1} parent=5 // pred_region
        %s1424 = ssub.s32 %s25, 2
        // Predicated region
        $region85: #{tpu_custom_call.1} parent=83 // pred_check
          %p1425 = pneg %p332
        $region86: #{tpu_custom_call.1} parent=83 // pred_check_branch
          %1427 = sbr.rel (%p1425) target = $region88
        $region87: #{tpu_custom_call.1} parent=83 // pred_region
          %s1428 = sand.u32 %s317, 1
          %s1429 = scalar_lea.sflag [#allocation4], %s1428
          %s1430 = sand.u32 %s317, 1
          %s1431 = smul.addr %s1430, 8
          %s1432 = scalar_lea.vmem [#allocation5], %s1431
          %1434 = dma.done %s1429, 128
        $region88: #{tpu_custom_call.1} parent=83 // pred_fallthru
          _
      $region84: #{tpu_custom_call.1} parent=5 // pred_fallthru
        _
    $region6: #{tpu_custom_call.1} parent=1 // loop_footer
      %s29 = sadd.s32 1, %s25
    $region7: #{tpu_custom_call.1} parent=1 // loop_footer_branch
      %24 = sbr.rel target = $region3
    $region8: #{tpu_custom_call.1} parent=1 // loop_exit
      _
    %1435 = vsyncpa [#allocation3], 1
    %s1436 = scalar_lea.sflag [#allocation3], 1
    %1437 = vsyncpa %s1436, 1
    %1438 = vsyncpa [#allocation4], 1
    %s1439 = scalar_lea.sflag [#allocation4], 1
    %1440 = vsyncpa %s1439, 1

</llo_original>
